<compile_context>
chip_gen: v7x
topology: tpu7x:2x2x1
jax: 0.10.0
libtpu: 0.0.40
codegen_flags: <defaults>
</compile_context>

<pallas_src>
import functools
import math

import jax
import jax.numpy as jnp
from jax import lax
from jax.experimental import pallas as pl
from jax.experimental.pallas import tpu as pltpu


def temporal_block_kernel(xp_ref, w1_ref, b1_ref, w2_ref, b2_ref, wd_ref, bd_ref,
                          out_ref, hp_ref, *, K, dilation, L, has_downsample):
    Bb = out_ref.shape[0]
    Cout = out_ref.shape[2]
    Cin = xp_ref.shape[2]
    P = (K - 1) * dilation
    Ppad = hp_ref.shape[1] - L          # sublane-aligned left pad of the conv2 staging buf

    def tap_matmul(load_tap, w_ref, n_ch):
        # sum over K taps of (Bb*L, n_ch) @ (n_ch, Cout), bf16 operands, f32 accumulation
        acc = None
        for k in range(K):
            xk = load_tap(k).reshape(Bb * L, n_ch).astype(jnp.bfloat16)
            yk = jnp.dot(xk, w_ref[k], preferred_element_type=jnp.float32)
            acc = yk if acc is None else acc + yk
        return acc

    # ---------------- conv1 (causal, dilated) + ReLU ----------------
    h = tap_matmul(lambda k: xp_ref[:, k * dilation:k * dilation + L, :], w1_ref, Cin)
    h = jnp.maximum(h + b1_ref[...], 0.0)                       # (Bb*L, Cout) f32

    # stage the (zero-)left-padded conv2 input in VMEM scratch (aligned stores only)
    if Ppad > 0:
        hp_ref[:, :Ppad, :] = jnp.zeros((Bb, Ppad, Cout), jnp.float32)
    hp_ref[:, Ppad:, :] = h.reshape(Bb, L, Cout)

    # ---------------- conv2 (causal, dilated) + ReLU ----------------
    off = Ppad - P
    out = tap_matmul(
        lambda k: hp_ref[:, off + k * dilation:off + k * dilation + L, :],
        w2_ref, Cout)
    out = jnp.maximum(out + b2_ref[...], 0.0)                   # (Bb*L, Cout) f32

    # ---------------- residual (optional 1x1 downsample) + output ReLU ----------------
    x0 = xp_ref[:, P:, :].reshape(Bb * L, Cin)                  # original (unpadded) input
    if has_downsample:
        res = jnp.dot(x0.astype(jnp.bfloat16), wd_ref[...],
                      preferred_element_type=jnp.float32) + bd_ref[...]
    else:
        res = x0                                                # Cin == Cout in this case
    out_ref[...] = jnp.maximum(out + res, 0.0).reshape(Bb, L, Cout)


def temporal_block(x, params, *, kernel_size, stride=1, dilation=1):
    if stride != 1:
        raise NotImplementedError("Pallas TemporalBlock supports stride == 1 only")
    B, Cin, L = x.shape
    K = kernel_size
    P = (K - 1) * dilation
    Cout = params["w1"].shape[0]
    has_downsample = "wd" in params

    # Per-tap transposed weights, cast to bf16 for the MXU; biases stay f32.
    w1_t = jnp.transpose(params["w1"], (2, 1, 0)).astype(jnp.bfloat16)     # (K, Cin, Cout)
    w2_t = jnp.transpose(params["w2"], (2, 1, 0)).astype(jnp.bfloat16)     # (K, Cout, Cout)
    b1 = params["b1"].reshape(1, Cout).astype(jnp.float32)
    b2 = params["b2"].reshape(1, Cout).astype(jnp.float32)
    if has_downsample:
        wd_t = jnp.transpose(params["wd"][:, :, 0], (1, 0)).astype(jnp.bfloat16)  # (Cin, Cout)
        bd = params["bd"].reshape(1, Cout).astype(jnp.float32)
    else:
        wd_t = jnp.zeros((Cin, Cout), jnp.bfloat16)     # unused by the kernel
        bd = jnp.zeros((1, Cout), jnp.float32)          # unused by the kernel

    # Channels-last + causal left pad (layout plumbing done once in XLA, not the kernel).
    xp = jnp.pad(jnp.transpose(x, (0, 2, 1)).astype(jnp.float32),
                 ((0, 0), (P, 0), (0, 0)))              # (B, L+P, Cin)

    # Batch folding: target >= 128 rows per grid step so the MXU row tile is full.
    Bb = min(B, max(1, pl.cdiv(128, L)))
    Bp = pl.cdiv(B, Bb) * Bb
    if Bp != B:
        xp = jnp.pad(xp, ((0, Bp - B), (0, 0), (0, 0)))
    grid = (Bp // Bb,)

    Ppad = ((P + 7) // 8) * 8 if P > 0 else 0           # keep in-kernel stores sublane-aligned

    flops = 2 * Bp * L * (K * Cin * Cout + K * Cout * Cout
                          + (Cin * Cout if has_downsample else 0))
    bytes_accessed = ((xp.size + Bp * L * Cout + b1.size + b2.size + bd.size) * 4
                      + (w1_t.size + w2_t.size + wd_t.size) * 2)

    kernel = functools.partial(temporal_block_kernel, K=K, dilation=dilation, L=L,
                               has_downsample=has_downsample)

    out = pl.pallas_call(
        kernel,
        out_shape=jax.ShapeDtypeStruct((Bp, L, Cout), jnp.float32),
        grid=grid,
        in_specs=[
            pl.BlockSpec((Bb, L + P, Cin), lambda b: (b, 0, 0)),   # x (padded, channels-last)
            pl.BlockSpec((K, Cin, Cout), lambda b: (0, 0, 0)),     # conv1 per-tap weights
            pl.BlockSpec((1, Cout), lambda b: (0, 0)),             # conv1 bias
            pl.BlockSpec((K, Cout, Cout), lambda b: (0, 0, 0)),    # conv2 per-tap weights
            pl.BlockSpec((1, Cout), lambda b: (0, 0)),             # conv2 bias
            pl.BlockSpec((Cin, Cout), lambda b: (0, 0)),           # downsample 1x1 weight
            pl.BlockSpec((1, Cout), lambda b: (0, 0)),             # downsample bias
        ],
        out_specs=pl.BlockSpec((Bb, L, Cout), lambda b: (b, 0, 0)),
        scratch_shapes=[pltpu.VMEM((Bb, L + Ppad, Cout), jnp.float32)],
        compiler_params=pltpu.CompilerParams(dimension_semantics=("parallel",)),
        cost_estimate=pl.CostEstimate(flops=flops, transcendentals=0,
                                      bytes_accessed=bytes_accessed),
    )(xp, w1_t, b1, w2_t, b2, wd_t, bd)

    return jnp.transpose(out[:B], (0, 2, 1))            # back to PyTorch (B, Cout, L)


# ----------------------- pure-JAX reference (for verification) -----------------------
def reference_forward(x, params, *, kernel_size, stride=1, dilation=1):
    P = (kernel_size - 1) * dilation
    dn = ("NCH", "OIH", "NCH")
    HP = lax.Precision.HIGHEST

    def conv1d(inp, w, b, pad, dil):
        y = lax.conv_general_dilated(inp, w, window_strides=(stride,),
                                     padding=[(pad, pad)], rhs_dilation=(dil,),
                                     dimension_numbers=dn, precision=HP)
        return y + b[None, :, None]

    out = conv1d(x, params["w1"], params["b1"], P, dilation)
    out = out[:, :, :-P] if P > 0 else out
    out = jnp.maximum(out, 0.0)                          # relu1 (dropout1 identity, eval)
    out = conv1d(out, params["w2"], params["b2"], P, dilation)
    out = out[:, :, :-P] if P > 0 else out
    out = jnp.maximum(out, 0.0)                          # relu2 (dropout2 identity, eval)
    res = conv1d(x, params["wd"], params["bd"], 0, 1) if "wd" in params else x
    return jnp.maximum(out + res, 0.0)


def make_params(key, *, n_inputs, n_outputs, kernel_size):
    ks = jax.random.split(key, 6)
    nrm = lambda k, shape, s: (s * jax.random.normal(k, shape)).astype(jnp.float32)
    s1 = 1.0 / math.sqrt(n_inputs * kernel_size)
    s2 = 1.0 / math.sqrt(n_outputs * kernel_size)
    p = {
        "w1": nrm(ks[0], (n_outputs, n_inputs, kernel_size), s1),
        "b1": nrm(ks[1], (n_outputs,), s1),
        "w2": nrm(ks[2], (n_outputs, n_outputs, kernel_size), s2),
        "b2": nrm(ks[3], (n_outputs,), s2),
    }
    if n_inputs != n_outputs:
        sd = 1.0 / math.sqrt(n_inputs)
        p["wd"] = nrm(ks[4], (n_outputs, n_inputs, 1), sd)
        p["bd"] = nrm(ks[5], (n_outputs,), sd)
    return p


def _run_case(key, *, B, n_inputs, n_outputs, L, kernel_size, dilation):
    kx, kp = jax.random.split(key)
    x = jax.random.normal(kx, (B, n_inputs, L), dtype=jnp.float32)
    params = make_params(kp, n_inputs=n_inputs, n_outputs=n_outputs,
                         kernel_size=kernel_size)

    out = temporal_block(x, params, kernel_size=kernel_size, stride=1, dilation=dilation)
    out = jax.block_until_ready(out)
    ref = reference_forward(x, params, kernel_size=kernel_size, stride=1,
                            dilation=dilation)

    assert out.shape == (B, n_outputs, L)
    assert bool(jnp.all(jnp.isfinite(out)))
    err = float(jnp.max(jnp.abs(out - ref)))
    if not jnp.allclose(out, ref, atol=5e-2, rtol=5e-2):
        raise AssertionError(f"kernel/reference mismatch, max err = {err}")


if __name__ == "__main__":
    key = jax.random.PRNGKey(0)
    k1, k2 = jax.random.split(key)
    # downsample path (n_inputs != n_outputs), dilated causal conv
    _run_case(k1, B=2, n_inputs=16, n_outputs=32, L=64, kernel_size=3, dilation=2)
    # identity-residual path (n_inputs == n_outputs)
    _run_case(k2, B=3, n_inputs=32, n_outputs=32, L=48, kernel_size=2, dilation=1)
    print("KERNEL_OK")
</pallas_src>

<mosaic_0001>
module attributes {stable_mosaic.version = 11 : i64} {
  func.func @temporal_block_kernel(%arg0: i32, %arg1: memref<2x68x16xf32, #tpu.memory_space<vmem>>, %arg2: memref<3x16x32xbf16, #tpu.memory_space<vmem>>, %arg3: memref<1x32xf32, #tpu.memory_space<vmem>>, %arg4: memref<3x32x32xbf16, #tpu.memory_space<vmem>>, %arg5: memref<1x32xf32, #tpu.memory_space<vmem>>, %arg6: memref<16x32xbf16, #tpu.memory_space<vmem>>, %arg7: memref<1x32xf32, #tpu.memory_space<vmem>>, %arg8: memref<2x64x32xf32, #tpu.memory_space<vmem>>, %arg9: memref<2x72x32xf32, #tpu.memory_space<vmem>>) attributes {dimension_semantics = [#tpu.dimension_semantics<parallel>], iteration_bounds = array<i64: 1>, scalar_prefetch = 0 : i64, scratch_operands = 1 : i64, tpu.core_type = #tpu.core_type<tc>, window_params = [{transform_indices = @transform_0, window_bounds = array<i64: 2, 68, 16>}, {pipeline_mode = #tpu.pipeline_mode<synchronous>, transform_indices = @transform_1, window_bounds = array<i64: 3, 16, 32>}, {pipeline_mode = #tpu.pipeline_mode<synchronous>, transform_indices = @transform_2, window_bounds = array<i64: 1, 32>}, {pipeline_mode = #tpu.pipeline_mode<synchronous>, transform_indices = @transform_3, window_bounds = array<i64: 3, 32, 32>}, {pipeline_mode = #tpu.pipeline_mode<synchronous>, transform_indices = @transform_4, window_bounds = array<i64: 1, 32>}, {pipeline_mode = #tpu.pipeline_mode<synchronous>, transform_indices = @transform_5, window_bounds = array<i64: 16, 32>}, {pipeline_mode = #tpu.pipeline_mode<synchronous>, transform_indices = @transform_6, window_bounds = array<i64: 1, 32>}, {transform_indices = @transform_7, window_bounds = array<i64: 2, 64, 32>}]} {
    %c0 = arith.constant 0 : index
    %c0_0 = arith.constant 0 : index
    %c0_1 = arith.constant 0 : index
    %0 = vector.load %arg1[%c0, %c0_0, %c0_1] : memref<2x68x16xf32, #tpu.memory_space<vmem>>, vector<2x64x16xf32>
    %1 = vector.shape_cast %0 : vector<2x64x16xf32> to vector<128x16xf32>
    %2 = arith.truncf %1 : vector<128x16xf32> to vector<128x16xbf16>
    %c0_2 = arith.constant 0 : index
    %c0_3 = arith.constant 0 : index
    %c0_4 = arith.constant 0 : index
    %3 = vector.load %arg2[%c0_2, %c0_3, %c0_4] : memref<3x16x32xbf16, #tpu.memory_space<vmem>>, vector<1x16x32xbf16>
    %4 = vector.shape_cast %3 : vector<1x16x32xbf16> to vector<16x32xbf16>
    %cst = arith.constant dense<0.000000e+00> : vector<128x32xf32>
    %5 = tpu.matmul %2, %4, %cst {dimension_numbers = #tpu.dot_dimension_numbers<[1], [0], [0], [1], [0, 0, 1, 1], [], []>} : vector<128x16xbf16>, vector<16x32xbf16>, vector<128x32xf32> -> vector<128x32xf32>
    %c0_5 = arith.constant 0 : index
    %c2 = arith.constant 2 : index
    %c0_6 = arith.constant 0 : index
    %6 = vector.load %arg1[%c0_5, %c2, %c0_6] : memref<2x68x16xf32, #tpu.memory_space<vmem>>, vector<2x64x16xf32>
    %7 = vector.shape_cast %6 : vector<2x64x16xf32> to vector<128x16xf32>
    %8 = arith.truncf %7 : vector<128x16xf32> to vector<128x16xbf16>
    %c1 = arith.constant 1 : index
    %c0_7 = arith.constant 0 : index
    %c0_8 = arith.constant 0 : index
    %9 = vector.load %arg2[%c1, %c0_7, %c0_8] : memref<3x16x32xbf16, #tpu.memory_space<vmem>>, vector<1x16x32xbf16>
    %10 = vector.shape_cast %9 : vector<1x16x32xbf16> to vector<16x32xbf16>
    %cst_9 = arith.constant dense<0.000000e+00> : vector<128x32xf32>
    %11 = tpu.matmul %8, %10, %cst_9 {dimension_numbers = #tpu.dot_dimension_numbers<[1], [0], [0], [1], [0, 0, 1, 1], [], []>} : vector<128x16xbf16>, vector<16x32xbf16>, vector<128x32xf32> -> vector<128x32xf32>
    %12 = arith.addf %5, %11 : vector<128x32xf32>
    %c0_10 = arith.constant 0 : index
    %c4 = arith.constant 4 : index
    %c0_11 = arith.constant 0 : index
    %13 = vector.load %arg1[%c0_10, %c4, %c0_11] : memref<2x68x16xf32, #tpu.memory_space<vmem>>, vector<2x64x16xf32>
    %14 = vector.shape_cast %13 : vector<2x64x16xf32> to vector<128x16xf32>
    %15 = arith.truncf %14 : vector<128x16xf32> to vector<128x16xbf16>
    %c2_12 = arith.constant 2 : index
    %c0_13 = arith.constant 0 : index
    %c0_14 = arith.constant 0 : index
    %16 = vector.load %arg2[%c2_12, %c0_13, %c0_14] : memref<3x16x32xbf16, #tpu.memory_space<vmem>>, vector<1x16x32xbf16>
    %17 = vector.shape_cast %16 : vector<1x16x32xbf16> to vector<16x32xbf16>
    %cst_15 = arith.constant dense<0.000000e+00> : vector<128x32xf32>
    %18 = tpu.matmul %15, %17, %cst_15 {dimension_numbers = #tpu.dot_dimension_numbers<[1], [0], [0], [1], [0, 0, 1, 1], [], []>} : vector<128x16xbf16>, vector<16x32xbf16>, vector<128x32xf32> -> vector<128x32xf32>
    %19 = arith.addf %12, %18 : vector<128x32xf32>
    %c0_16 = arith.constant 0 : index
    %c0_17 = arith.constant 0 : index
    %20 = vector.load %arg3[%c0_16, %c0_17] : memref<1x32xf32, #tpu.memory_space<vmem>>, vector<1x32xf32>
    %21 = vector.broadcast %20 : vector<1x32xf32> to vector<128x32xf32>
    %22 = arith.addf %19, %21 : vector<128x32xf32>
    %cst_18 = arith.constant 0.000000e+00 : f32
    %23 = vector.broadcast %cst_18 : f32 to vector<128x32xf32>
    %24 = arith.maximumf %22, %23 : vector<128x32xf32>
    %cst_19 = arith.constant 0.000000e+00 : f32
    %25 = vector.broadcast %cst_19 : f32 to vector<2x8x32xf32>
    %c0_20 = arith.constant 0 : index
    %c0_21 = arith.constant 0 : index
    %c0_22 = arith.constant 0 : index
    %26 = vector.load %arg9[%c0_20, %c0_21, %c0_22] : memref<2x72x32xf32, #tpu.memory_space<vmem>>, vector<2x8x32xf32>
    tpu.vector_store %arg9[%c0_20, %c0_21, %c0_22], %25 {strides = array<i32>} : memref<2x72x32xf32, #tpu.memory_space<vmem>>, vector<2x8x32xf32>,
    %27 = vector.shape_cast %24 : vector<128x32xf32> to vector<2x64x32xf32>
    %c0_23 = arith.constant 0 : index
    %c8 = arith.constant 8 : index
    %c0_24 = arith.constant 0 : index
    %28 = vector.load %arg9[%c0_23, %c8, %c0_24] : memref<2x72x32xf32, #tpu.memory_space<vmem>>, vector<2x64x32xf32>
    tpu.vector_store %arg9[%c0_23, %c8, %c0_24], %27 {strides = array<i32>} : memref<2x72x32xf32, #tpu.memory_space<vmem>>, vector<2x64x32xf32>,
    %c0_25 = arith.constant 0 : index
    %c4_26 = arith.constant 4 : index
    %c0_27 = arith.constant 0 : index
    %29 = vector.load %arg9[%c0_25, %c4_26, %c0_27] : memref<2x72x32xf32, #tpu.memory_space<vmem>>, vector<2x64x32xf32>
    %30 = vector.shape_cast %29 : vector<2x64x32xf32> to vector<128x32xf32>
    %31 = arith.truncf %30 : vector<128x32xf32> to vector<128x32xbf16>
    %c0_28 = arith.constant 0 : index
    %c0_29 = arith.constant 0 : index
    %c0_30 = arith.constant 0 : index
    %32 = vector.load %arg4[%c0_28, %c0_29, %c0_30] : memref<3x32x32xbf16, #tpu.memory_space<vmem>>, vector<1x32x32xbf16>
    %33 = vector.shape_cast %32 : vector<1x32x32xbf16> to vector<32x32xbf16>
    %cst_31 = arith.constant dense<0.000000e+00> : vector<128x32xf32>
    %34 = tpu.matmul %31, %33, %cst_31 {dimension_numbers = #tpu.dot_dimension_numbers<[1], [0], [0], [1], [0, 0, 1, 1], [], []>} : vector<128x32xbf16>, vector<32x32xbf16>, vector<128x32xf32> -> vector<128x32xf32>
    %c0_32 = arith.constant 0 : index
    %c6 = arith.constant 6 : index
    %c0_33 = arith.constant 0 : index
    %35 = vector.load %arg9[%c0_32, %c6, %c0_33] : memref<2x72x32xf32, #tpu.memory_space<vmem>>, vector<2x64x32xf32>
    %36 = vector.shape_cast %35 : vector<2x64x32xf32> to vector<128x32xf32>
    %37 = arith.truncf %36 : vector<128x32xf32> to vector<128x32xbf16>
    %c1_34 = arith.constant 1 : index
    %c0_35 = arith.constant 0 : index
    %c0_36 = arith.constant 0 : index
    %38 = vector.load %arg4[%c1_34, %c0_35, %c0_36] : memref<3x32x32xbf16, #tpu.memory_space<vmem>>, vector<1x32x32xbf16>
    %39 = vector.shape_cast %38 : vector<1x32x32xbf16> to vector<32x32xbf16>
    %cst_37 = arith.constant dense<0.000000e+00> : vector<128x32xf32>
    %40 = tpu.matmul %37, %39, %cst_37 {dimension_numbers = #tpu.dot_dimension_numbers<[1], [0], [0], [1], [0, 0, 1, 1], [], []>} : vector<128x32xbf16>, vector<32x32xbf16>, vector<128x32xf32> -> vector<128x32xf32>
    %41 = arith.addf %34, %40 : vector<128x32xf32>
    %c0_38 = arith.constant 0 : index
    %c8_39 = arith.constant 8 : index
    %c0_40 = arith.constant 0 : index
    %42 = vector.load %arg9[%c0_38, %c8_39, %c0_40] : memref<2x72x32xf32, #tpu.memory_space<vmem>>, vector<2x64x32xf32>
    %43 = vector.shape_cast %42 : vector<2x64x32xf32> to vector<128x32xf32>
    %44 = arith.truncf %43 : vector<128x32xf32> to vector<128x32xbf16>
    %c2_41 = arith.constant 2 : index
    %c0_42 = arith.constant 0 : index
    %c0_43 = arith.constant 0 : index
    %45 = vector.load %arg4[%c2_41, %c0_42, %c0_43] : memref<3x32x32xbf16, #tpu.memory_space<vmem>>, vector<1x32x32xbf16>
    %46 = vector.shape_cast %45 : vector<1x32x32xbf16> to vector<32x32xbf16>
    %cst_44 = arith.constant dense<0.000000e+00> : vector<128x32xf32>
    %47 = tpu.matmul %44, %46, %cst_44 {dimension_numbers = #tpu.dot_dimension_numbers<[1], [0], [0], [1], [0, 0, 1, 1], [], []>} : vector<128x32xbf16>, vector<32x32xbf16>, vector<128x32xf32> -> vector<128x32xf32>
    %48 = arith.addf %41, %47 : vector<128x32xf32>
    %c0_45 = arith.constant 0 : index
    %c0_46 = arith.constant 0 : index
    %49 = vector.load %arg5[%c0_45, %c0_46] : memref<1x32xf32, #tpu.memory_space<vmem>>, vector<1x32xf32>
    %50 = vector.broadcast %49 : vector<1x32xf32> to vector<128x32xf32>
    %51 = arith.addf %48, %50 : vector<128x32xf32>
    %cst_47 = arith.constant 0.000000e+00 : f32
    %52 = vector.broadcast %cst_47 : f32 to vector<128x32xf32>
    %53 = arith.maximumf %51, %52 : vector<128x32xf32>
    %c0_48 = arith.constant 0 : index
    %c4_49 = arith.constant 4 : index
    %c0_50 = arith.constant 0 : index
    %54 = vector.load %arg1[%c0_48, %c4_49, %c0_50] : memref<2x68x16xf32, #tpu.memory_space<vmem>>, vector<2x64x16xf32>
    %55 = vector.shape_cast %54 : vector<2x64x16xf32> to vector<128x16xf32>
    %56 = arith.truncf %55 : vector<128x16xf32> to vector<128x16xbf16>
    %c0_51 = arith.constant 0 : index
    %c0_52 = arith.constant 0 : index
    %57 = vector.load %arg6[%c0_51, %c0_52] : memref<16x32xbf16, #tpu.memory_space<vmem>>, vector<16x32xbf16>
    %cst_53 = arith.constant dense<0.000000e+00> : vector<128x32xf32>
    %58 = tpu.matmul %56, %57, %cst_53 {dimension_numbers = #tpu.dot_dimension_numbers<[1], [0], [0], [1], [0, 0, 1, 1], [], []>} : vector<128x16xbf16>, vector<16x32xbf16>, vector<128x32xf32> -> vector<128x32xf32>
    %c0_54 = arith.constant 0 : index
    %c0_55 = arith.constant 0 : index
    %59 = vector.load %arg7[%c0_54, %c0_55] : memref<1x32xf32, #tpu.memory_space<vmem>>, vector<1x32xf32>
    %60 = vector.broadcast %59 : vector<1x32xf32> to vector<128x32xf32>
    %61 = arith.addf %58, %60 : vector<128x32xf32>
    %62 = arith.addf %53, %61 : vector<128x32xf32>
    %cst_56 = arith.constant 0.000000e+00 : f32
    %63 = vector.broadcast %cst_56 : f32 to vector<128x32xf32>
    %64 = arith.maximumf %62, %63 : vector<128x32xf32>
    %65 = vector.shape_cast %64 : vector<128x32xf32> to vector<2x64x32xf32>
    %c0_57 = arith.constant 0 : index
    %c0_58 = arith.constant 0 : index
    %c0_59 = arith.constant 0 : index
    %66 = vector.load %arg8[%c0_57, %c0_58, %c0_59] : memref<2x64x32xf32, #tpu.memory_space<vmem>>, vector<2x64x32xf32>
    tpu.vector_store %arg8[%c0_57, %c0_58, %c0_59], %65 {strides = array<i32>} : memref<2x64x32xf32, #tpu.memory_space<vmem>>, vector<2x64x32xf32>,
    return
  }
  func.func @transform_0(%arg0: i32) -> (i32, i32, i32) {
    %c0_i32 = arith.constant 0 : i32
    %c0_i32_0 = arith.constant 0 : i32
    %c0_i32_1 = arith.constant 0 : i32
    return %arg0, %c0_i32, %c0_i32_0 : i32, i32, i32
  }
  func.func @transform_1(%arg0: i32) -> (i32, i32, i32) {
    %c0_i32 = arith.constant 0 : i32
    %c0_i32_0 = arith.constant 0 : i32
    %c0_i32_1 = arith.constant 0 : i32
    %c0_i32_2 = arith.constant 0 : i32
    return %c0_i32, %c0_i32_0, %c0_i32_1 : i32, i32, i32
  }
  func.func @transform_2(%arg0: i32) -> (i32, i32) {
    %c0_i32 = arith.constant 0 : i32
    %c0_i32_0 = arith.constant 0 : i32
    %c0_i32_1 = arith.constant 0 : i32
    return %c0_i32, %c0_i32_0 : i32, i32
  }
  func.func @transform_3(%arg0: i32) -> (i32, i32, i32) {
    %c0_i32 = arith.constant 0 : i32
    %c0_i32_0 = arith.constant 0 : i32
    %c0_i32_1 = arith.constant 0 : i32
    %c0_i32_2 = arith.constant 0 : i32
    return %c0_i32, %c0_i32_0, %c0_i32_1 : i32, i32, i32
  }
  func.func @transform_4(%arg0: i32) -> (i32, i32) {
    %c0_i32 = arith.constant 0 : i32
    %c0_i32_0 = arith.constant 0 : i32
    %c0_i32_1 = arith.constant 0 : i32
    return %c0_i32, %c0_i32_0 : i32, i32
  }
  func.func @transform_5(%arg0: i32) -> (i32, i32) {
    %c0_i32 = arith.constant 0 : i32
    %c0_i32_0 = arith.constant 0 : i32
    %c0_i32_1 = arith.constant 0 : i32
    return %c0_i32, %c0_i32_0 : i32, i32
  }
  func.func @transform_6(%arg0: i32) -> (i32, i32) {
    %c0_i32 = arith.constant 0 : i32
    %c0_i32_0 = arith.constant 0 : i32
    %c0_i32_1 = arith.constant 0 : i32
    return %c0_i32, %c0_i32_0 : i32, i32
  }
  func.func @transform_7(%arg0: i32) -> (i32, i32, i32) {
    %c0_i32 = arith.constant 0 : i32
    %c0_i32_0 = arith.constant 0 : i32
    %c0_i32_1 = arith.constant 0 : i32
    return %arg0, %c0_i32, %c0_i32_0 : i32, i32, i32
  }
}

</mosaic_0001>

<llo_original>
// kernel: tpu_custom_call.1
$region0: #{tpu_custom_call.1}
  #allocation0 [shape = 'u32[]', space=smem, size = 0x4, offset = 0x4, fixed_abs, tag = 'smem constant byte address 0x4 - core index']
  #allocation1 [shape = 'u32[144,128]{1,0:T(1,128)}', space=vmem, size = 0x12000, scoped, tag = 'internal scratch']
  #allocation2 [shape = 'f32[2,72,32]{2,1,0:T(8,128)}', space=vmem, size = 0x12000, scoped, tag = 'scratch operand']
  %s0 = inlined_call_operand.vmem [shape: f32[2,68,16], index: 0, kind: input, shape index: {}]
  %s1 = inlined_call_operand.vmem [shape: bf16[3,16,32], index: 1, kind: input, shape index: {}]
  %s2 = inlined_call_operand.vmem [shape: f32[1,32], index: 2, kind: input, shape index: {}]
  %s3 = inlined_call_operand.vmem [shape: bf16[3,32,32], index: 3, kind: input, shape index: {}]
  %s4 = inlined_call_operand.vmem [shape: f32[1,32], index: 4, kind: input, shape index: {}]
  %s5 = inlined_call_operand.vmem [shape: bf16[16,32], index: 5, kind: input, shape index: {}]
  %s6 = inlined_call_operand.vmem [shape: f32[1,32], index: 6, kind: input, shape index: {}]
  %s7 = inlined_call_operand.vmem [shape: f32[2,64,32], index: 7, kind: output, shape index: {}]
  %s8 = sld [smem:[#allocation0]]
  $region38: #{tpu_custom_call.1} parent=0
    _
  %s10 = ssub.s32 1, %s8
  %s11 = scalar_select 0, %s10, %s8
  // Predicated region
  $region2: #{tpu_custom_call.1} parent=0 // pred_check
    _
  $region3: #{tpu_custom_call.1} parent=0 // pred_check_branch
    %13 = sbr.rel (0) target = $region5
  $region4: #{tpu_custom_call.1} parent=0 // pred_region
    _
  $region5: #{tpu_custom_call.1} parent=0 // pred_fallthru
    _
  // Predicated region
  $region6: #{tpu_custom_call.1} parent=0 // pred_check
    _
  $region7: #{tpu_custom_call.1} parent=0 // pred_check_branch
    %15 = sbr.rel (0) target = $region9
  $region8: #{tpu_custom_call.1} parent=0 // pred_region
    _
  $region9: #{tpu_custom_call.1} parent=0 // pred_fallthru
    _
  // Predicated region
  $region10: #{tpu_custom_call.1} parent=0 // pred_check
    _
  $region11: #{tpu_custom_call.1} parent=0 // pred_check_branch
    %17 = sbr.rel (0) target = $region13
  $region12: #{tpu_custom_call.1} parent=0 // pred_region
    _
  $region13: #{tpu_custom_call.1} parent=0 // pred_fallthru
    _
  // Predicated region
  $region14: #{tpu_custom_call.1} parent=0 // pred_check
    _
  $region15: #{tpu_custom_call.1} parent=0 // pred_check_branch
    %19 = sbr.rel (0) target = $region17
  $region16: #{tpu_custom_call.1} parent=0 // pred_region
    _
  $region17: #{tpu_custom_call.1} parent=0 // pred_fallthru
    _
  // Predicated region
  $region18: #{tpu_custom_call.1} parent=0 // pred_check
    _
  $region19: #{tpu_custom_call.1} parent=0 // pred_check_branch
    %21 = sbr.rel (0) target = $region21
  $region20: #{tpu_custom_call.1} parent=0 // pred_region
    _
  $region21: #{tpu_custom_call.1} parent=0 // pred_fallthru
    _
  // Predicated region
  $region22: #{tpu_custom_call.1} parent=0 // pred_check
    _
  $region23: #{tpu_custom_call.1} parent=0 // pred_check_branch
    %23 = sbr.rel (0) target = $region25
  $region24: #{tpu_custom_call.1} parent=0 // pred_region
    _
  $region25: #{tpu_custom_call.1} parent=0 // pred_fallthru
    _
  // Predicated region
  $region26: #{tpu_custom_call.1} parent=0 // pred_check
    _
  $region27: #{tpu_custom_call.1} parent=0 // pred_check_branch
    %25 = sbr.rel (0) target = $region29
  $region28: #{tpu_custom_call.1} parent=0 // pred_region
    _
  $region29: #{tpu_custom_call.1} parent=0 // pred_fallthru
    _
  %v27 = vld [vmem:[%s0] sm:$0xff]
  %v28 = vld [vmem:[%s0 + $0x8] sm:$0xff]
  %v29 = vld [vmem:[%s0 + $0x10] sm:$0xff]
  %v30 = vld [vmem:[%s0 + $0x18] sm:$0xff]
  %v31 = vld [vmem:[%s0 + $0x20] sm:$0xff]
  %v32 = vld [vmem:[%s0 + $0x28] sm:$0xff]
  %v33 = vld [vmem:[%s0 + $0x30] sm:$0xff]
  %v34 = vld [vmem:[%s0 + $0x38] sm:$0xff]
  %v35 = vld [vmem:[%s0 + $0x48] sm:$0xff]
  %v36 = vld [vmem:[%s0 + $0x50] sm:$0xff]
  %v37 = vld [vmem:[%s0 + $0x58] sm:$0xff]
  %v38 = vld [vmem:[%s0 + $0x60] sm:$0xff]
  %v39 = vld [vmem:[%s0 + $0x68] sm:$0xff]
  %v40 = vld [vmem:[%s0 + $0x70] sm:$0xff]
  %v41 = vld [vmem:[%s0 + $0x78] sm:$0xff]
  %v42 = vld [vmem:[%s0 + $0x80] sm:$0xff]
  %v43 = vpack.c.bf16 %v28, %v27
  %v44 = vpack.c.bf16 %v30, %v29
  %v45 = vpack.c.bf16 %v32, %v31
  %v46 = vpack.c.bf16 %v34, %v33
  %v47 = vpack.c.bf16 %v36, %v35
  %v48 = vpack.c.bf16 %v38, %v37
  %v49 = vpack.c.bf16 %v40, %v39
  %v50 = vpack.c.bf16 %v42, %v41
  %v51 = vld [vmem:[%s1] sm:$0xf]
  %v52 = vld [vmem:[%s1 + $0x4] sm:$0xf]
  %v53 = vld [vmem:[%s0 + $0x2] sm:$0xff]
  %v54 = vld [vmem:[%s0 + $0xa] sm:$0xff]
  %v55 = vld [vmem:[%s0 + $0x12] sm:$0xff]
  %v56 = vld [vmem:[%s0 + $0x1a] sm:$0xff]
  %v57 = vld [vmem:[%s0 + $0x22] sm:$0xff]
  %v58 = vld [vmem:[%s0 + $0x2a] sm:$0xff]
  %v59 = vld [vmem:[%s0 + $0x32] sm:$0xff]
  %v60 = vld [vmem:[%s0 + $0x3a] sm:$0xff]
  %v61 = vld [vmem:[%s0 + $0x4a] sm:$0xff]
  %v62 = vld [vmem:[%s0 + $0x52] sm:$0xff]
  %v63 = vld [vmem:[%s0 + $0x5a] sm:$0xff]
  %v64 = vld [vmem:[%s0 + $0x62] sm:$0xff]
  %v65 = vld [vmem:[%s0 + $0x6a] sm:$0xff]
  %v66 = vld [vmem:[%s0 + $0x72] sm:$0xff]
  %v67 = vld [vmem:[%s0 + $0x7a] sm:$0xff]
  %v68 = vld [vmem:[%s0 + $0x82] sm:$0xff]
  %v69 = vpack.c.bf16 %v54, %v53
  %v70 = vpack.c.bf16 %v56, %v55
  %v71 = vpack.c.bf16 %v58, %v57
  %v72 = vpack.c.bf16 %v60, %v59
  %v73 = vpack.c.bf16 %v62, %v61
  %v74 = vpack.c.bf16 %v64, %v63
  %v75 = vpack.c.bf16 %v66, %v65
  %v76 = vpack.c.bf16 %v68, %v67
  %s77 = scalar_lea.vmem %s1, 8
  %v78 = vld [vmem:[%s77] sm:$0xf]
  %v79 = vld [vmem:[%s77 + $0x4] sm:$0xf]
  %v82 = vunpack.c.l.b16 %v78
  %v83 = vunpack.c.l.b16 %v79
  %v84 = vpack.c.b16 %v83, %v82
  %vm86 = vcmask 130048
  %v88 = vsel %vm86, %v69, 0
  %v91 = vsel %vm86, %v70, 0
  %v94 = vsel %vm86, %v71, 0
  %v97 = vsel %vm86, %v72, 0
  %v100 = vsel %vm86, %v73, 0
  %v103 = vsel %vm86, %v74, 0
  %v106 = vsel %vm86, %v75, 0
  %v109 = vsel %vm86, %v76, 0
  %111 = vmatprep.subr.bf16.mxu0 0
  %112 = vmatpush1.bf16.msra.mxu0 %v84
  %113 = vmatprep.subr.bf16.mxu0 0
  %114 = vmatpush1.bf16.msra.mxu0 0
  %115 = vmatprep.subr.bf16.mxu0 0
  %116 = vmatpush1.bf16.msra.mxu0 0
  %117 = vmatprep.subr.bf16.mxu0 0
  %118 = vmatpush1.bf16.msra.mxu0 0
  %119 = vmatprep.subr.bf16.mxu0 0
  %120 = vmatpush1.bf16.msra.mxu0 0
  %121 = vmatprep.subr.bf16.mxu0 0
  %122 = vmatpush1.bf16.msra.mxu0 0
  %123 = vmatprep.subr.bf16.mxu0 0
  %124 = vmatpush1.bf16.msra.mxu0 0
  %125 = vmatprep.subr.bf16.mxu0 0
  %126 = vmatpush1.bf16.msra.mxu0 0
  %127 = vmatprep.subr.bf16.mxu0 0
  %128 = vmatpush1.bf16.msra.mxu0 0
  %129 = vmatprep.subr.bf16.mxu0 0
  %130 = vmatpush1.bf16.msra.mxu0 0
  %131 = vmatprep.subr.bf16.mxu0 0
  %132 = vmatpush1.bf16.msra.mxu0 0
  %133 = vmatprep.subr.bf16.mxu0 0
  %134 = vmatpush1.bf16.msra.mxu0 0
  %135 = vmatprep.subr.bf16.mxu0 0
  %136 = vmatpush1.bf16.msra.mxu0 0
  %137 = vmatprep.subr.bf16.mxu0 0
  %138 = vmatpush1.bf16.msra.mxu0 0
  %139 = vmatprep.subr.bf16.mxu0 0
  %140 = vmatpush1.bf16.msra.mxu0 0
  %141 = vmatprep.subr.bf16.mxu0 0
  %142 = vmatpush1.bf16.msra.mxu0 0
  %143 = vmatprep.mubr.bf16.mxu0 0
  %144 = vmatmul.mubr.bf16.gmra.mrb[0].mxu0 %v88
  %v145 = vpop.f32.mrb[0].mxu0
  %v146 = vadd.f32 0.0, %v145
  %v147 = vpop.f32.mrb[0].mxu0
  %v148 = vpop.f32.mrb[0].mxu0
  %v149 = vadd.f32 0.0, %v148
  %v150 = vpop.f32.mrb[0].mxu0
  %151 = vmatprep.mubr.bf16.mxu0 0
  %152 = vmatmul.mubr.bf16.gmra.mrb[0].mxu0 %v91
  %v153 = vpop.f32.mrb[0].mxu0
  %v154 = vadd.f32 0.0, %v153
  %v155 = vpop.f32.mrb[0].mxu0
  %v156 = vpop.f32.mrb[0].mxu0
  %v157 = vadd.f32 0.0, %v156
  %v158 = vpop.f32.mrb[0].mxu0
  %159 = vmatprep.mubr.bf16.mxu0 0
  %160 = vmatmul.mubr.bf16.gmra.mrb[0].mxu0 %v94
  %v161 = vpop.f32.mrb[0].mxu0
  %v162 = vadd.f32 0.0, %v161
  %v163 = vpop.f32.mrb[0].mxu0
  %v164 = vpop.f32.mrb[0].mxu0
  %v165 = vadd.f32 0.0, %v164
  %v166 = vpop.f32.mrb[0].mxu0
  %167 = vmatprep.mubr.bf16.mxu0 0
  %168 = vmatmul.mubr.bf16.gmra.mrb[0].mxu0 %v97
  %v169 = vpop.f32.mrb[0].mxu0
  %v170 = vadd.f32 0.0, %v169
  %v171 = vpop.f32.mrb[0].mxu0
  %v172 = vpop.f32.mrb[0].mxu0
  %v173 = vadd.f32 0.0, %v172
  %v174 = vpop.f32.mrb[0].mxu0
  %175 = vmatprep.mubr.bf16.mxu0 0
  %176 = vmatmul.mubr.bf16.gmra.mrb[0].mxu0 %v100
  %v177 = vpop.f32.mrb[0].mxu0
  %v178 = vadd.f32 0.0, %v177
  %v179 = vpop.f32.mrb[0].mxu0
  %v180 = vpop.f32.mrb[0].mxu0
  %v181 = vadd.f32 0.0, %v180
  %v182 = vpop.f32.mrb[0].mxu0
  %183 = vmatprep.mubr.bf16.mxu0 0
  %184 = vmatmul.mubr.bf16.gmra.mrb[0].mxu0 %v103
  %v185 = vpop.f32.mrb[0].mxu0
  %v186 = vadd.f32 0.0, %v185
  %v187 = vpop.f32.mrb[0].mxu0
  %v188 = vpop.f32.mrb[0].mxu0
  %v189 = vadd.f32 0.0, %v188
  %v190 = vpop.f32.mrb[0].mxu0
  %191 = vmatprep.mubr.bf16.mxu0 0
  %192 = vmatmul.mubr.bf16.gmra.mrb[0].mxu0 %v106
  %v193 = vpop.f32.mrb[0].mxu0
  %v194 = vadd.f32 0.0, %v193
  %v195 = vpop.f32.mrb[0].mxu0
  %v196 = vpop.f32.mrb[0].mxu0
  %v197 = vadd.f32 0.0, %v196
  %v198 = vpop.f32.mrb[0].mxu0
  %199 = vmatprep.mubr.bf16.mxu0 0
  %200 = vmatmul.mubr.bf16.gmra.mrb[0].mxu0 %v109
  %v201 = vpop.f32.mrb[0].mxu0
  %v202 = vadd.f32 0.0, %v201
  %v203 = vpop.f32.mrb[0].mxu0
  %v204 = vpop.f32.mrb[0].mxu0
  %v205 = vadd.f32 0.0, %v204
  %v206 = vpop.f32.mrb[0].mxu0
  %207 = vdwg.mxu0
  %v210 = vunpack.c.l.b16 %v51
  %v211 = vunpack.c.l.b16 %v52
  %v212 = vpack.c.b16 %v211, %v210
  %v215 = vsel %vm86, %v43, 0
  %v218 = vsel %vm86, %v44, 0
  %v221 = vsel %vm86, %v45, 0
  %v224 = vsel %vm86, %v46, 0
  %v227 = vsel %vm86, %v47, 0
  %v230 = vsel %vm86, %v48, 0
  %v233 = vsel %vm86, %v49, 0
  %v236 = vsel %vm86, %v50, 0
  %238 = vmatprep.subr.bf16.mxu0 0
  %239 = vmatpush1.bf16.msra.mxu0 %v212
  %240 = vmatprep.subr.bf16.mxu0 0
  %241 = vmatpush1.bf16.msra.mxu0 0
  %242 = vmatprep.subr.bf16.mxu0 0
  %243 = vmatpush1.bf16.msra.mxu0 0
  %244 = vmatprep.subr.bf16.mxu0 0
  %245 = vmatpush1.bf16.msra.mxu0 0
  %246 = vmatprep.subr.bf16.mxu0 0
  %247 = vmatpush1.bf16.msra.mxu0 0
  %248 = vmatprep.subr.bf16.mxu0 0
  %249 = vmatpush1.bf16.msra.mxu0 0
  %250 = vmatprep.subr.bf16.mxu0 0
  %251 = vmatpush1.bf16.msra.mxu0 0
  %252 = vmatprep.subr.bf16.mxu0 0
  %253 = vmatpush1.bf16.msra.mxu0 0
  %254 = vmatprep.subr.bf16.mxu0 0
  %255 = vmatpush1.bf16.msra.mxu0 0
  %256 = vmatprep.subr.bf16.mxu0 0
  %257 = vmatpush1.bf16.msra.mxu0 0
  %258 = vmatprep.subr.bf16.mxu0 0
  %259 = vmatpush1.bf16.msra.mxu0 0
  %260 = vmatprep.subr.bf16.mxu0 0
  %261 = vmatpush1.bf16.msra.mxu0 0
  %262 = vmatprep.subr.bf16.mxu0 0
  %263 = vmatpush1.bf16.msra.mxu0 0
  %264 = vmatprep.subr.bf16.mxu0 0
  %265 = vmatpush1.bf16.msra.mxu0 0
  %266 = vmatprep.subr.bf16.mxu0 0
  %267 = vmatpush1.bf16.msra.mxu0 0
  %268 = vmatprep.subr.bf16.mxu0 0
  %269 = vmatpush1.bf16.msra.mxu0 0
  %270 = vmatprep.mubr.bf16.mxu0 0
  %271 = vmatmul.mubr.bf16.gmra.mrb[0].mxu0 %v215
  %v272 = vpop.f32.mrb[0].mxu0
  %v273 = vadd.f32 %v146, %v272
  %v274 = vpop.f32.mrb[0].mxu0
  %v275 = vpop.f32.mrb[0].mxu0
  %v276 = vadd.f32 %v149, %v275
  %v277 = vpop.f32.mrb[0].mxu0
  %278 = vmatprep.mubr.bf16.mxu0 0
  %279 = vmatmul.mubr.bf16.gmra.mrb[0].mxu0 %v218
  %v280 = vpop.f32.mrb[0].mxu0
  %v281 = vadd.f32 %v154, %v280
  %v282 = vpop.f32.mrb[0].mxu0
  %v283 = vpop.f32.mrb[0].mxu0
  %v284 = vadd.f32 %v157, %v283
  %v285 = vpop.f32.mrb[0].mxu0
  %286 = vmatprep.mubr.bf16.mxu0 0
  %287 = vmatmul.mubr.bf16.gmra.mrb[0].mxu0 %v221
  %v288 = vpop.f32.mrb[0].mxu0
  %v289 = vadd.f32 %v162, %v288
  %v290 = vpop.f32.mrb[0].mxu0
  %v291 = vpop.f32.mrb[0].mxu0
  %v292 = vadd.f32 %v165, %v291
  %v293 = vpop.f32.mrb[0].mxu0
  %294 = vmatprep.mubr.bf16.mxu0 0
  %295 = vmatmul.mubr.bf16.gmra.mrb[0].mxu0 %v224
  %v296 = vpop.f32.mrb[0].mxu0
  %v297 = vadd.f32 %v170, %v296
  %v298 = vpop.f32.mrb[0].mxu0
  %v299 = vpop.f32.mrb[0].mxu0
  %v300 = vadd.f32 %v173, %v299
  %v301 = vpop.f32.mrb[0].mxu0
  %302 = vmatprep.mubr.bf16.mxu0 0
  %303 = vmatmul.mubr.bf16.gmra.mrb[0].mxu0 %v227
  %v304 = vpop.f32.mrb[0].mxu0
  %v305 = vadd.f32 %v178, %v304
  %v306 = vpop.f32.mrb[0].mxu0
  %v307 = vpop.f32.mrb[0].mxu0
  %v308 = vadd.f32 %v181, %v307
  %v309 = vpop.f32.mrb[0].mxu0
  %310 = vmatprep.mubr.bf16.mxu0 0
  %311 = vmatmul.mubr.bf16.gmra.mrb[0].mxu0 %v230
  %v312 = vpop.f32.mrb[0].mxu0
  %v313 = vadd.f32 %v186, %v312
  %v314 = vpop.f32.mrb[0].mxu0
  %v315 = vpop.f32.mrb[0].mxu0
  %v316 = vadd.f32 %v189, %v315
  %v317 = vpop.f32.mrb[0].mxu0
  %318 = vmatprep.mubr.bf16.mxu0 0
  %319 = vmatmul.mubr.bf16.gmra.mrb[0].mxu0 %v233
  %v320 = vpop.f32.mrb[0].mxu0
  %v321 = vadd.f32 %v194, %v320
  %v322 = vpop.f32.mrb[0].mxu0
  %v323 = vpop.f32.mrb[0].mxu0
  %v324 = vadd.f32 %v197, %v323
  %v325 = vpop.f32.mrb[0].mxu0
  %326 = vmatprep.mubr.bf16.mxu0 0
  %327 = vmatmul.mubr.bf16.gmra.mrb[0].mxu0 %v236
  %v328 = vpop.f32.mrb[0].mxu0
  %v329 = vadd.f32 %v202, %v328
  %v330 = vpop.f32.mrb[0].mxu0
  %v331 = vpop.f32.mrb[0].mxu0
  %v332 = vadd.f32 %v205, %v331
  %v333 = vpop.f32.mrb[0].mxu0
  %334 = vdwg.mxu0
  %v335 = vld [vmem:[%s0 + $0x4] sm:$0xff]
  %v336 = vld [vmem:[%s0 + $0xc] sm:$0xff]
  %v337 = vld [vmem:[%s0 + $0x14] sm:$0xff]
  %v338 = vld [vmem:[%s0 + $0x1c] sm:$0xff]
  %v339 = vld [vmem:[%s0 + $0x24] sm:$0xff]
  %v340 = vld [vmem:[%s0 + $0x2c] sm:$0xff]
  %v341 = vld [vmem:[%s0 + $0x34] sm:$0xff]
  %v342 = vld [vmem:[%s0 + $0x3c] sm:$0xff]
  %v343 = vld [vmem:[%s0 + $0x4c] sm:$0xff]
  %v344 = vld [vmem:[%s0 + $0x54] sm:$0xff]
  %v345 = vld [vmem:[%s0 + $0x5c] sm:$0xff]
  %v346 = vld [vmem:[%s0 + $0x64] sm:$0xff]
  %v347 = vld [vmem:[%s0 + $0x6c] sm:$0xff]
  %v348 = vld [vmem:[%s0 + $0x74] sm:$0xff]
  %v349 = vld [vmem:[%s0 + $0x7c] sm:$0xff]
  %v350 = vld [vmem:[%s0 + $0x84] sm:$0xff]
  %v351 = vpack.c.bf16 %v336, %v335
  %v352 = vpack.c.bf16 %v338, %v337
  %v353 = vpack.c.bf16 %v340, %v339
  %v354 = vpack.c.bf16 %v342, %v341
  %v355 = vpack.c.bf16 %v344, %v343
  %v356 = vpack.c.bf16 %v346, %v345
  %v357 = vpack.c.bf16 %v348, %v347
  %v358 = vpack.c.bf16 %v350, %v349
  %s359 = scalar_lea.vmem %s1, 16
  %v360 = vld [vmem:[%s359] sm:$0xf]
  %v361 = vld [vmem:[%s359 + $0x4] sm:$0xf]
  %v364 = vunpack.c.l.b16 %v360
  %v365 = vunpack.c.l.b16 %v361
  %v366 = vpack.c.b16 %v365, %v364
  %v369 = vsel %vm86, %v351, 0
  %v372 = vsel %vm86, %v352, 0
  %v375 = vsel %vm86, %v353, 0
  %v378 = vsel %vm86, %v354, 0
  %v381 = vsel %vm86, %v355, 0
  %v384 = vsel %vm86, %v356, 0
  %v387 = vsel %vm86, %v357, 0
  %v390 = vsel %vm86, %v358, 0
  %392 = vmatprep.subr.bf16.mxu0 0
  %393 = vmatpush1.bf16.msra.mxu0 %v366
  %394 = vmatprep.subr.bf16.mxu0 0
  %395 = vmatpush1.bf16.msra.mxu0 0
  %396 = vmatprep.subr.bf16.mxu0 0
  %397 = vmatpush1.bf16.msra.mxu0 0
  %398 = vmatprep.subr.bf16.mxu0 0
  %399 = vmatpush1.bf16.msra.mxu0 0
  %400 = vmatprep.subr.bf16.mxu0 0
  %401 = vmatpush1.bf16.msra.mxu0 0
  %402 = vmatprep.subr.bf16.mxu0 0
  %403 = vmatpush1.bf16.msra.mxu0 0
  %404 = vmatprep.subr.bf16.mxu0 0
  %405 = vmatpush1.bf16.msra.mxu0 0
  %406 = vmatprep.subr.bf16.mxu0 0
  %407 = vmatpush1.bf16.msra.mxu0 0
  %408 = vmatprep.subr.bf16.mxu0 0
  %409 = vmatpush1.bf16.msra.mxu0 0
  %410 = vmatprep.subr.bf16.mxu0 0
  %411 = vmatpush1.bf16.msra.mxu0 0
  %412 = vmatprep.subr.bf16.mxu0 0
  %413 = vmatpush1.bf16.msra.mxu0 0
  %414 = vmatprep.subr.bf16.mxu0 0
  %415 = vmatpush1.bf16.msra.mxu0 0
  %416 = vmatprep.subr.bf16.mxu0 0
  %417 = vmatpush1.bf16.msra.mxu0 0
  %418 = vmatprep.subr.bf16.mxu0 0
  %419 = vmatpush1.bf16.msra.mxu0 0
  %420 = vmatprep.subr.bf16.mxu0 0
  %421 = vmatpush1.bf16.msra.mxu0 0
  %422 = vmatprep.subr.bf16.mxu0 0
  %423 = vmatpush1.bf16.msra.mxu0 0
  %424 = vmatprep.mubr.bf16.mxu0 0
  %425 = vmatmul.mubr.bf16.gmra.mrb[0].mxu0 %v369
  %v426 = vpop.f32.mrb[0].mxu0
  %v427 = vadd.f32 0.0, %v426
  %v428 = vpop.f32.mrb[0].mxu0
  %v429 = vpop.f32.mrb[0].mxu0
  %v430 = vadd.f32 0.0, %v429
  %v431 = vpop.f32.mrb[0].mxu0
  %432 = vmatprep.mubr.bf16.mxu0 0
  %433 = vmatmul.mubr.bf16.gmra.mrb[0].mxu0 %v372
  %v434 = vpop.f32.mrb[0].mxu0
  %v435 = vadd.f32 0.0, %v434
  %v436 = vpop.f32.mrb[0].mxu0
  %v437 = vpop.f32.mrb[0].mxu0
  %v438 = vadd.f32 0.0, %v437
  %v439 = vpop.f32.mrb[0].mxu0
  %440 = vmatprep.mubr.bf16.mxu0 0
  %441 = vmatmul.mubr.bf16.gmra.mrb[0].mxu0 %v375
  %v442 = vpop.f32.mrb[0].mxu0
  %v443 = vadd.f32 0.0, %v442
  %v444 = vpop.f32.mrb[0].mxu0
  %v445 = vpop.f32.mrb[0].mxu0
  %v446 = vadd.f32 0.0, %v445
  %v447 = vpop.f32.mrb[0].mxu0
  %448 = vmatprep.mubr.bf16.mxu0 0
  %449 = vmatmul.mubr.bf16.gmra.mrb[0].mxu0 %v378
  %v450 = vpop.f32.mrb[0].mxu0
  %v451 = vadd.f32 0.0, %v450
  %v452 = vpop.f32.mrb[0].mxu0
  %v453 = vpop.f32.mrb[0].mxu0
  %v454 = vadd.f32 0.0, %v453
  %v455 = vpop.f32.mrb[0].mxu0
  %456 = vmatprep.mubr.bf16.mxu0 0
  %457 = vmatmul.mubr.bf16.gmra.mrb[0].mxu0 %v381
  %v458 = vpop.f32.mrb[0].mxu0
  %v459 = vadd.f32 0.0, %v458
  %v460 = vpop.f32.mrb[0].mxu0
  %v461 = vpop.f32.mrb[0].mxu0
  %v462 = vadd.f32 0.0, %v461
  %v463 = vpop.f32.mrb[0].mxu0
  %464 = vmatprep.mubr.bf16.mxu0 0
  %465 = vmatmul.mubr.bf16.gmra.mrb[0].mxu0 %v384
  %v466 = vpop.f32.mrb[0].mxu0
  %v467 = vadd.f32 0.0, %v466
  %v468 = vpop.f32.mrb[0].mxu0
  %v469 = vpop.f32.mrb[0].mxu0
  %v470 = vadd.f32 0.0, %v469
  %v471 = vpop.f32.mrb[0].mxu0
  %472 = vmatprep.mubr.bf16.mxu0 0
  %473 = vmatmul.mubr.bf16.gmra.mrb[0].mxu0 %v387
  %v474 = vpop.f32.mrb[0].mxu0
  %v475 = vadd.f32 0.0, %v474
  %v476 = vpop.f32.mrb[0].mxu0
  %v477 = vpop.f32.mrb[0].mxu0
  %v478 = vadd.f32 0.0, %v477
  %v479 = vpop.f32.mrb[0].mxu0
  %480 = vmatprep.mubr.bf16.mxu0 0
  %481 = vmatmul.mubr.bf16.gmra.mrb[0].mxu0 %v390
  %v482 = vpop.f32.mrb[0].mxu0
  %v483 = vadd.f32 0.0, %v482
  %v484 = vpop.f32.mrb[0].mxu0
  %v485 = vpop.f32.mrb[0].mxu0
  %v486 = vadd.f32 0.0, %v485
  %v487 = vpop.f32.mrb[0].mxu0
  %488 = vdwg.mxu0
  %v489 = vadd.f32 %v273, %v427
  %v490 = vadd.f32 %v276, %v430
  %v491 = vadd.f32 %v281, %v435
  %v492 = vadd.f32 %v284, %v438
  %v493 = vadd.f32 %v289, %v443
  %v494 = vadd.f32 %v292, %v446
  %v495 = vadd.f32 %v297, %v451
  %v496 = vadd.f32 %v300, %v454
  %v497 = vadd.f32 %v305, %v459
  %v498 = vadd.f32 %v308, %v462
  %v499 = vadd.f32 %v313, %v467
  %v500 = vadd.f32 %v316, %v470
  %v501 = vadd.f32 %v321, %v475
  %v502 = vadd.f32 %v324, %v478
  %v503 = vadd.f32 %v329, %v483
  %v504 = vadd.f32 %v332, %v486
  %v505 = vld [vmem:[%s2] sm:$0x1]
  %v507 = vlaneseq
  %v508 = vshrl.u32 %v507, 7
  %v509 = vsub.s32 0, %v508
  %v510 = vrot.slane %v505, %v509
  %v512 = vadd.f32 %v489, %v510
  %v513 = vadd.f32 %v490, %v510
  %v514 = vadd.f32 %v491, %v510
  %v515 = vadd.f32 %v492, %v510
  %v516 = vadd.f32 %v493, %v510
  %v517 = vadd.f32 %v494, %v510
  %v518 = vadd.f32 %v495, %v510
  %v519 = vadd.f32 %v496, %v510
  %v520 = vadd.f32 %v497, %v510
  %v521 = vadd.f32 %v498, %v510
  %v522 = vadd.f32 %v499, %v510
  %v523 = vadd.f32 %v500, %v510
  %v524 = vadd.f32 %v501, %v510
  %v525 = vadd.f32 %v502, %v510
  %v526 = vadd.f32 %v503, %v510
  %v527 = vadd.f32 %v504, %v510
  %v528 = vmax.f32 %v512, 0.0
  %v529 = vmax.f32 %v513, 0.0
  %v530 = vmax.f32 %v514, 0.0
  %v531 = vmax.f32 %v515, 0.0
  %v532 = vmax.f32 %v516, 0.0
  %v533 = vmax.f32 %v517, 0.0
  %v534 = vmax.f32 %v518, 0.0
  %v535 = vmax.f32 %v519, 0.0
  %v536 = vmax.f32 %v520, 0.0
  %v537 = vmax.f32 %v521, 0.0
  %v538 = vmax.f32 %v522, 0.0
  %v539 = vmax.f32 %v523, 0.0
  %v540 = vmax.f32 %v524, 0.0
  %v541 = vmax.f32 %v525, 0.0
  %v542 = vmax.f32 %v526, 0.0
  %v543 = vmax.f32 %v527, 0.0
  %vm544 = vcmask 261120
  %545 = vst.msk [vmem:[#allocation2] sm:$0xff] %vm544, 0.0
  %546 = vst.msk [vmem:[#allocation2 + $0x48] sm:$0xff] %vm544, 0.0
  %547 = vst.msk [vmem:[#allocation2 + $0x8] sm:$0xff] %vm544, %v528
  %548 = vst.msk [vmem:[#allocation2 + $0x10] sm:$0xff] %vm544, %v529
  %549 = vst.msk [vmem:[#allocation2 + $0x18] sm:$0xff] %vm544, %v530
  %550 = vst.msk [vmem:[#allocation2 + $0x20] sm:$0xff] %vm544, %v531
  %551 = vst.msk [vmem:[#allocation2 + $0x28] sm:$0xff] %vm544, %v532
  %552 = vst.msk [vmem:[#allocation2 + $0x30] sm:$0xff] %vm544, %v533
  %553 = vst.msk [vmem:[#allocation2 + $0x38] sm:$0xff] %vm544, %v534
  %554 = vst.msk [vmem:[#allocation2 + $0x40] sm:$0xff] %vm544, %v535
  %555 = vst.msk [vmem:[#allocation2 + $0x50] sm:$0xff] %vm544, %v536
  %556 = vst.msk [vmem:[#allocation2 + $0x58] sm:$0xff] %vm544, %v537
  %557 = vst.msk [vmem:[#allocation2 + $0x60] sm:$0xff] %vm544, %v538
  %558 = vst.msk [vmem:[#allocation2 + $0x68] sm:$0xff] %vm544, %v539
  %559 = vst.msk [vmem:[#allocation2 + $0x70] sm:$0xff] %vm544, %v540
  %560 = vst.msk [vmem:[#allocation2 + $0x78] sm:$0xff] %vm544, %v541
  %561 = vst.msk [vmem:[#allocation2 + $0x80] sm:$0xff] %vm544, %v542
  %562 = vst.msk [vmem:[#allocation2 + $0x88] sm:$0xff] %vm544, %v543
  %v563 = vld [vmem:[#allocation2 + $0x4] sm:$0xff]
  %v564 = vld [vmem:[#allocation2 + $0xc] sm:$0xff]
  %v565 = vld [vmem:[#allocation2 + $0x14] sm:$0xff]
  %v566 = vld [vmem:[#allocation2 + $0x1c] sm:$0xff]
  %v567 = vld [vmem:[#allocation2 + $0x24] sm:$0xff]
  %v568 = vld [vmem:[#allocation2 + $0x2c] sm:$0xff]
  %v569 = vld [vmem:[#allocation2 + $0x34] sm:$0xff]
  %v570 = vld [vmem:[#allocation2 + $0x3c] sm:$0xff]
  %v571 = vld [vmem:[#allocation2 + $0x4c] sm:$0xff]
  %v572 = vld [vmem:[#allocation2 + $0x54] sm:$0xff]
  %v573 = vld [vmem:[#allocation2 + $0x5c] sm:$0xff]
  %v574 = vld [vmem:[#allocation2 + $0x64] sm:$0xff]
  %v575 = vld [vmem:[#allocation2 + $0x6c] sm:$0xff]
  %v576 = vld [vmem:[#allocation2 + $0x74] sm:$0xff]
  %v577 = vld [vmem:[#allocation2 + $0x7c] sm:$0xff]
  %v578 = vld [vmem:[#allocation2 + $0x84] sm:$0xff]
  %v579 = vpack.c.bf16 %v564, %v563
  %v580 = vpack.c.bf16 %v566, %v565
  %v581 = vpack.c.bf16 %v568, %v567
  %v582 = vpack.c.bf16 %v570, %v569
  %v583 = vpack.c.bf16 %v572, %v571
  %v584 = vpack.c.bf16 %v574, %v573
  %v585 = vpack.c.bf16 %v576, %v575
  %v586 = vpack.c.bf16 %v578, %v577
  %v587 = vld [vmem:[%s3] sm:$0xf]
  %v588 = vld [vmem:[%s3 + $0x4] sm:$0xf]
  %v589 = vld [vmem:[%s3 + $0x8] sm:$0xf]
  %v590 = vld [vmem:[%s3 + $0xc] sm:$0xf]
  %v591 = vld [vmem:[#allocation2 + $0x6] sm:$0xff]
  %v592 = vld [vmem:[#allocation2 + $0xe] sm:$0xff]
  %v593 = vld [vmem:[#allocation2 + $0x16] sm:$0xff]
  %v594 = vld [vmem:[#allocation2 + $0x1e] sm:$0xff]
  %v595 = vld [vmem:[#allocation2 + $0x26] sm:$0xff]
  %v596 = vld [vmem:[#allocation2 + $0x2e] sm:$0xff]
  %v597 = vld [vmem:[#allocation2 + $0x36] sm:$0xff]
  %v598 = vld [vmem:[#allocation2 + $0x3e] sm:$0xff]
  %v599 = vld [vmem:[#allocation2 + $0x4e] sm:$0xff]
  %v600 = vld [vmem:[#allocation2 + $0x56] sm:$0xff]
  %v601 = vld [vmem:[#allocation2 + $0x5e] sm:$0xff]
  %v602 = vld [vmem:[#allocation2 + $0x66] sm:$0xff]
  %v603 = vld [vmem:[#allocation2 + $0x6e] sm:$0xff]
  %v604 = vld [vmem:[#allocation2 + $0x76] sm:$0xff]
  %v605 = vld [vmem:[#allocation2 + $0x7e] sm:$0xff]
  %v606 = vld [vmem:[#allocation2 + $0x86] sm:$0xff]
  %v607 = vpack.c.bf16 %v592, %v591
  %v608 = vpack.c.bf16 %v594, %v593
  %v609 = vpack.c.bf16 %v596, %v595
  %v610 = vpack.c.bf16 %v598, %v597
  %v611 = vpack.c.bf16 %v600, %v599
  %v612 = vpack.c.bf16 %v602, %v601
  %v613 = vpack.c.bf16 %v604, %v603
  %v614 = vpack.c.bf16 %v606, %v605
  %s615 = scalar_lea.vmem %s3, 16
  %v616 = vld [vmem:[%s615] sm:$0xf]
  %v617 = vld [vmem:[%s615 + $0x4] sm:$0xf]
  %v618 = vld [vmem:[%s615 + $0x8] sm:$0xf]
  %v619 = vld [vmem:[%s615 + $0xc] sm:$0xf]
  %v624 = vunpack.c.l.b16 %v616
  %v625 = vunpack.c.l.b16 %v617
  %v626 = vunpack.c.l.b16 %v618
  %v627 = vunpack.c.l.b16 %v619
  %v628 = vpack.c.b16 %v625, %v624
  %v629 = vpack.c.b16 %v627, %v626
  %v633 = vsel %vm544, %v607, 0
  %v636 = vsel %vm544, %v608, 0
  %v639 = vsel %vm544, %v609, 0
  %v642 = vsel %vm544, %v610, 0
  %v645 = vsel %vm544, %v611, 0
  %v648 = vsel %vm544, %v612, 0
  %v651 = vsel %vm544, %v613, 0
  %v654 = vsel %vm544, %v614, 0
  %656 = vmatprep.subr.bf16.mxu0 0
  %657 = vmatpush1.bf16.msra.mxu0 %v628
  %658 = vmatprep.subr.bf16.mxu0 0
  %659 = vmatpush1.bf16.msra.mxu0 %v629
  %660 = vmatprep.subr.bf16.mxu0 0
  %661 = vmatpush1.bf16.msra.mxu0 0
  %662 = vmatprep.subr.bf16.mxu0 0
  %663 = vmatpush1.bf16.msra.mxu0 0
  %664 = vmatprep.subr.bf16.mxu0 0
  %665 = vmatpush1.bf16.msra.mxu0 0
  %666 = vmatprep.subr.bf16.mxu0 0
  %667 = vmatpush1.bf16.msra.mxu0 0
  %668 = vmatprep.subr.bf16.mxu0 0
  %669 = vmatpush1.bf16.msra.mxu0 0
  %670 = vmatprep.subr.bf16.mxu0 0
  %671 = vmatpush1.bf16.msra.mxu0 0
  %672 = vmatprep.subr.bf16.mxu0 0
  %673 = vmatpush1.bf16.msra.mxu0 0
  %674 = vmatprep.subr.bf16.mxu0 0
  %675 = vmatpush1.bf16.msra.mxu0 0
  %676 = vmatprep.subr.bf16.mxu0 0
  %677 = vmatpush1.bf16.msra.mxu0 0
  %678 = vmatprep.subr.bf16.mxu0 0
  %679 = vmatpush1.bf16.msra.mxu0 0
  %680 = vmatprep.subr.bf16.mxu0 0
  %681 = vmatpush1.bf16.msra.mxu0 0
  %682 = vmatprep.subr.bf16.mxu0 0
  %683 = vmatpush1.bf16.msra.mxu0 0
  %684 = vmatprep.subr.bf16.mxu0 0
  %685 = vmatpush1.bf16.msra.mxu0 0
  %686 = vmatprep.subr.bf16.mxu0 0
  %687 = vmatpush1.bf16.msra.mxu0 0
  %688 = vmatprep.mubr.bf16.mxu0 0
  %689 = vmatmul.mubr.bf16.gmra.mrb[0].mxu0 %v633
  %v690 = vpop.f32.mrb[0].mxu0
  %v691 = vadd.f32 0.0, %v690
  %v692 = vpop.f32.mrb[0].mxu0
  %v693 = vpop.f32.mrb[0].mxu0
  %v694 = vadd.f32 0.0, %v693
  %v695 = vpop.f32.mrb[0].mxu0
  %696 = vmatprep.mubr.bf16.mxu0 0
  %697 = vmatmul.mubr.bf16.gmra.mrb[0].mxu0 %v636
  %v698 = vpop.f32.mrb[0].mxu0
  %v699 = vadd.f32 0.0, %v698
  %v700 = vpop.f32.mrb[0].mxu0
  %v701 = vpop.f32.mrb[0].mxu0
  %v702 = vadd.f32 0.0, %v701
  %v703 = vpop.f32.mrb[0].mxu0
  %704 = vmatprep.mubr.bf16.mxu0 0
  %705 = vmatmul.mubr.bf16.gmra.mrb[0].mxu0 %v639
  %v706 = vpop.f32.mrb[0].mxu0
  %v707 = vadd.f32 0.0, %v706
  %v708 = vpop.f32.mrb[0].mxu0
  %v709 = vpop.f32.mrb[0].mxu0
  %v710 = vadd.f32 0.0, %v709
  %v711 = vpop.f32.mrb[0].mxu0
  %712 = vmatprep.mubr.bf16.mxu0 0
  %713 = vmatmul.mubr.bf16.gmra.mrb[0].mxu0 %v642
  %v714 = vpop.f32.mrb[0].mxu0
  %v715 = vadd.f32 0.0, %v714
  %v716 = vpop.f32.mrb[0].mxu0
  %v717 = vpop.f32.mrb[0].mxu0
  %v718 = vadd.f32 0.0, %v717
  %v719 = vpop.f32.mrb[0].mxu0
  %720 = vmatprep.mubr.bf16.mxu0 0
  %721 = vmatmul.mubr.bf16.gmra.mrb[0].mxu0 %v645
  %v722 = vpop.f32.mrb[0].mxu0
  %v723 = vadd.f32 0.0, %v722
  %v724 = vpop.f32.mrb[0].mxu0
  %v725 = vpop.f32.mrb[0].mxu0
  %v726 = vadd.f32 0.0, %v725
  %v727 = vpop.f32.mrb[0].mxu0
  %728 = vmatprep.mubr.bf16.mxu0 0
  %729 = vmatmul.mubr.bf16.gmra.mrb[0].mxu0 %v648
  %v730 = vpop.f32.mrb[0].mxu0
  %v731 = vadd.f32 0.0, %v730
  %v732 = vpop.f32.mrb[0].mxu0
  %v733 = vpop.f32.mrb[0].mxu0
  %v734 = vadd.f32 0.0, %v733
  %v735 = vpop.f32.mrb[0].mxu0
  %736 = vmatprep.mubr.bf16.mxu0 0
  %737 = vmatmul.mubr.bf16.gmra.mrb[0].mxu0 %v651
  %v738 = vpop.f32.mrb[0].mxu0
  %v739 = vadd.f32 0.0, %v738
  %v740 = vpop.f32.mrb[0].mxu0
  %v741 = vpop.f32.mrb[0].mxu0
  %v742 = vadd.f32 0.0, %v741
  %v743 = vpop.f32.mrb[0].mxu0
  %744 = vmatprep.mubr.bf16.mxu0 0
  %745 = vmatmul.mubr.bf16.gmra.mrb[0].mxu0 %v654
  %v746 = vpop.f32.mrb[0].mxu0
  %v747 = vadd.f32 0.0, %v746
  %v748 = vpop.f32.mrb[0].mxu0
  %v749 = vpop.f32.mrb[0].mxu0
  %v750 = vadd.f32 0.0, %v749
  %v751 = vpop.f32.mrb[0].mxu0
  %752 = vdwg.mxu0
  %v757 = vunpack.c.l.b16 %v587
  %v758 = vunpack.c.l.b16 %v588
  %v759 = vunpack.c.l.b16 %v589
  %v760 = vunpack.c.l.b16 %v590
  %v761 = vpack.c.b16 %v758, %v757
  %v762 = vpack.c.b16 %v760, %v759
  %v766 = vsel %vm544, %v579, 0
  %v769 = vsel %vm544, %v580, 0
  %v772 = vsel %vm544, %v581, 0
  %v775 = vsel %vm544, %v582, 0
  %v778 = vsel %vm544, %v583, 0
  %v781 = vsel %vm544, %v584, 0
  %v784 = vsel %vm544, %v585, 0
  %v787 = vsel %vm544, %v586, 0
  %789 = vmatprep.subr.bf16.mxu0 0
  %790 = vmatpush1.bf16.msra.mxu0 %v761
  %791 = vmatprep.subr.bf16.mxu0 0
  %792 = vmatpush1.bf16.msra.mxu0 %v762
  %793 = vmatprep.subr.bf16.mxu0 0
  %794 = vmatpush1.bf16.msra.mxu0 0
  %795 = vmatprep.subr.bf16.mxu0 0
  %796 = vmatpush1.bf16.msra.mxu0 0
  %797 = vmatprep.subr.bf16.mxu0 0
  %798 = vmatpush1.bf16.msra.mxu0 0
  %799 = vmatprep.subr.bf16.mxu0 0
  %800 = vmatpush1.bf16.msra.mxu0 0
  %801 = vmatprep.subr.bf16.mxu0 0
  %802 = vmatpush1.bf16.msra.mxu0 0
  %803 = vmatprep.subr.bf16.mxu0 0
  %804 = vmatpush1.bf16.msra.mxu0 0
  %805 = vmatprep.subr.bf16.mxu0 0
  %806 = vmatpush1.bf16.msra.mxu0 0
  %807 = vmatprep.subr.bf16.mxu0 0
  %808 = vmatpush1.bf16.msra.mxu0 0
  %809 = vmatprep.subr.bf16.mxu0 0
  %810 = vmatpush1.bf16.msra.mxu0 0
  %811 = vmatprep.subr.bf16.mxu0 0
  %812 = vmatpush1.bf16.msra.mxu0 0
  %813 = vmatprep.subr.bf16.mxu0 0
  %814 = vmatpush1.bf16.msra.mxu0 0
  %815 = vmatprep.subr.bf16.mxu0 0
  %816 = vmatpush1.bf16.msra.mxu0 0
  %817 = vmatprep.subr.bf16.mxu0 0
  %818 = vmatpush1.bf16.msra.mxu0 0
  %819 = vmatprep.subr.bf16.mxu0 0
  %820 = vmatpush1.bf16.msra.mxu0 0
  %821 = vmatprep.mubr.bf16.mxu0 0
  %822 = vmatmul.mubr.bf16.gmra.mrb[0].mxu0 %v766
  %v823 = vpop.f32.mrb[0].mxu0
  %v824 = vadd.f32 %v691, %v823
  %v825 = vpop.f32.mrb[0].mxu0
  %v826 = vpop.f32.mrb[0].mxu0
  %v827 = vadd.f32 %v694, %v826
  %v828 = vpop.f32.mrb[0].mxu0
  %829 = vmatprep.mubr.bf16.mxu0 0
  %830 = vmatmul.mubr.bf16.gmra.mrb[0].mxu0 %v769
  %v831 = vpop.f32.mrb[0].mxu0
  %v832 = vadd.f32 %v699, %v831
  %v833 = vpop.f32.mrb[0].mxu0
  %v834 = vpop.f32.mrb[0].mxu0
  %v835 = vadd.f32 %v702, %v834
  %v836 = vpop.f32.mrb[0].mxu0
  %837 = vmatprep.mubr.bf16.mxu0 0
  %838 = vmatmul.mubr.bf16.gmra.mrb[0].mxu0 %v772
  %v839 = vpop.f32.mrb[0].mxu0
  %v840 = vadd.f32 %v707, %v839
  %v841 = vpop.f32.mrb[0].mxu0
  %v842 = vpop.f32.mrb[0].mxu0
  %v843 = vadd.f32 %v710, %v842
  %v844 = vpop.f32.mrb[0].mxu0
  %845 = vmatprep.mubr.bf16.mxu0 0
  %846 = vmatmul.mubr.bf16.gmra.mrb[0].mxu0 %v775
  %v847 = vpop.f32.mrb[0].mxu0
  %v848 = vadd.f32 %v715, %v847
  %v849 = vpop.f32.mrb[0].mxu0
  %v850 = vpop.f32.mrb[0].mxu0
  %v851 = vadd.f32 %v718, %v850
  %v852 = vpop.f32.mrb[0].mxu0
  %853 = vmatprep.mubr.bf16.mxu0 0
  %854 = vmatmul.mubr.bf16.gmra.mrb[0].mxu0 %v778
  %v855 = vpop.f32.mrb[0].mxu0
  %v856 = vadd.f32 %v723, %v855
  %v857 = vpop.f32.mrb[0].mxu0
  %v858 = vpop.f32.mrb[0].mxu0
  %v859 = vadd.f32 %v726, %v858
  %v860 = vpop.f32.mrb[0].mxu0
  %861 = vmatprep.mubr.bf16.mxu0 0
  %862 = vmatmul.mubr.bf16.gmra.mrb[0].mxu0 %v781
  %v863 = vpop.f32.mrb[0].mxu0
  %v864 = vadd.f32 %v731, %v863
  %v865 = vpop.f32.mrb[0].mxu0
  %v866 = vpop.f32.mrb[0].mxu0
  %v867 = vadd.f32 %v734, %v866
  %v868 = vpop.f32.mrb[0].mxu0
  %869 = vmatprep.mubr.bf16.mxu0 0
  %870 = vmatmul.mubr.bf16.gmra.mrb[0].mxu0 %v784
  %v871 = vpop.f32.mrb[0].mxu0
  %v872 = vadd.f32 %v739, %v871
  %v873 = vpop.f32.mrb[0].mxu0
  %v874 = vpop.f32.mrb[0].mxu0
  %v875 = vadd.f32 %v742, %v874
  %v876 = vpop.f32.mrb[0].mxu0
  %877 = vmatprep.mubr.bf16.mxu0 0
  %878 = vmatmul.mubr.bf16.gmra.mrb[0].mxu0 %v787
  %v879 = vpop.f32.mrb[0].mxu0
  %v880 = vadd.f32 %v747, %v879
  %v881 = vpop.f32.mrb[0].mxu0
  %v882 = vpop.f32.mrb[0].mxu0
  %v883 = vadd.f32 %v750, %v882
  %v884 = vpop.f32.mrb[0].mxu0
  %885 = vdwg.mxu0
  %v886 = vld [vmem:[#allocation2 + $0x8] sm:$0xff]
  %v887 = vld [vmem:[#allocation2 + $0x10] sm:$0xff]
  %v888 = vld [vmem:[#allocation2 + $0x18] sm:$0xff]
  %v889 = vld [vmem:[#allocation2 + $0x20] sm:$0xff]
  %v890 = vld [vmem:[#allocation2 + $0x28] sm:$0xff]
  %v891 = vld [vmem:[#allocation2 + $0x30] sm:$0xff]
  %v892 = vld [vmem:[#allocation2 + $0x38] sm:$0xff]
  %v893 = vld [vmem:[#allocation2 + $0x40] sm:$0xff]
  %v894 = vld [vmem:[#allocation2 + $0x50] sm:$0xff]
  %v895 = vld [vmem:[#allocation2 + $0x58] sm:$0xff]
  %v896 = vld [vmem:[#allocation2 + $0x60] sm:$0xff]
  %v897 = vld [vmem:[#allocation2 + $0x68] sm:$0xff]
  %v898 = vld [vmem:[#allocation2 + $0x70] sm:$0xff]
  %v899 = vld [vmem:[#allocation2 + $0x78] sm:$0xff]
  %v900 = vld [vmem:[#allocation2 + $0x80] sm:$0xff]
  %v901 = vld [vmem:[#allocation2 + $0x88] sm:$0xff]
  %v902 = vpack.c.bf16 %v887, %v886
  %v903 = vpack.c.bf16 %v889, %v888
  %v904 = vpack.c.bf16 %v891, %v890
  %v905 = vpack.c.bf16 %v893, %v892
  %v906 = vpack.c.bf16 %v895, %v894
  %v907 = vpack.c.bf16 %v897, %v896
  %v908 = vpack.c.bf16 %v899, %v898
  %v909 = vpack.c.bf16 %v901, %v900
  %s910 = scalar_lea.vmem %s3, 32
  %v911 = vld [vmem:[%s910] sm:$0xf]
  %v912 = vld [vmem:[%s910 + $0x4] sm:$0xf]
  %v913 = vld [vmem:[%s910 + $0x8] sm:$0xf]
  %v914 = vld [vmem:[%s910 + $0xc] sm:$0xf]
  %v919 = vunpack.c.l.b16 %v911
  %v920 = vunpack.c.l.b16 %v912
  %v921 = vunpack.c.l.b16 %v913
  %v922 = vunpack.c.l.b16 %v914
  %v923 = vpack.c.b16 %v920, %v919
  %v924 = vpack.c.b16 %v922, %v921
  %v928 = vsel %vm544, %v902, 0
  %v931 = vsel %vm544, %v903, 0
  %v934 = vsel %vm544, %v904, 0
  %v937 = vsel %vm544, %v905, 0
  %v940 = vsel %vm544, %v906, 0
  %v943 = vsel %vm544, %v907, 0
  %v946 = vsel %vm544, %v908, 0
  %v949 = vsel %vm544, %v909, 0
  %951 = vmatprep.subr.bf16.mxu0 0
  %952 = vmatpush1.bf16.msra.mxu0 %v923
  %953 = vmatprep.subr.bf16.mxu0 0
  %954 = vmatpush1.bf16.msra.mxu0 %v924
  %955 = vmatprep.subr.bf16.mxu0 0
  %956 = vmatpush1.bf16.msra.mxu0 0
  %957 = vmatprep.subr.bf16.mxu0 0
  %958 = vmatpush1.bf16.msra.mxu0 0
  %959 = vmatprep.subr.bf16.mxu0 0
  %960 = vmatpush1.bf16.msra.mxu0 0
  %961 = vmatprep.subr.bf16.mxu0 0
  %962 = vmatpush1.bf16.msra.mxu0 0
  %963 = vmatprep.subr.bf16.mxu0 0
  %964 = vmatpush1.bf16.msra.mxu0 0
  %965 = vmatprep.subr.bf16.mxu0 0
  %966 = vmatpush1.bf16.msra.mxu0 0
  %967 = vmatprep.subr.bf16.mxu0 0
  %968 = vmatpush1.bf16.msra.mxu0 0
  %969 = vmatprep.subr.bf16.mxu0 0
  %970 = vmatpush1.bf16.msra.mxu0 0
  %971 = vmatprep.subr.bf16.mxu0 0
  %972 = vmatpush1.bf16.msra.mxu0 0
  %973 = vmatprep.subr.bf16.mxu0 0
  %974 = vmatpush1.bf16.msra.mxu0 0
  %975 = vmatprep.subr.bf16.mxu0 0
  %976 = vmatpush1.bf16.msra.mxu0 0
  %977 = vmatprep.subr.bf16.mxu0 0
  %978 = vmatpush1.bf16.msra.mxu0 0
  %979 = vmatprep.subr.bf16.mxu0 0
  %980 = vmatpush1.bf16.msra.mxu0 0
  %981 = vmatprep.subr.bf16.mxu0 0
  %982 = vmatpush1.bf16.msra.mxu0 0
  %983 = vmatprep.mubr.bf16.mxu0 0
  %984 = vmatmul.mubr.bf16.gmra.mrb[0].mxu0 %v928
  %v985 = vpop.f32.mrb[0].mxu0
  %v986 = vadd.f32 0.0, %v985
  %v987 = vpop.f32.mrb[0].mxu0
  %v988 = vpop.f32.mrb[0].mxu0
  %v989 = vadd.f32 0.0, %v988
  %v990 = vpop.f32.mrb[0].mxu0
  %991 = vmatprep.mubr.bf16.mxu0 0
  %992 = vmatmul.mubr.bf16.gmra.mrb[0].mxu0 %v931
  %v993 = vpop.f32.mrb[0].mxu0
  %v994 = vadd.f32 0.0, %v993
  %v995 = vpop.f32.mrb[0].mxu0
  %v996 = vpop.f32.mrb[0].mxu0
  %v997 = vadd.f32 0.0, %v996
  %v998 = vpop.f32.mrb[0].mxu0
  %999 = vmatprep.mubr.bf16.mxu0 0
  %1000 = vmatmul.mubr.bf16.gmra.mrb[0].mxu0 %v934
  %v1001 = vpop.f32.mrb[0].mxu0
  %v1002 = vadd.f32 0.0, %v1001
  %v1003 = vpop.f32.mrb[0].mxu0
  %v1004 = vpop.f32.mrb[0].mxu0
  %v1005 = vadd.f32 0.0, %v1004
  %v1006 = vpop.f32.mrb[0].mxu0
  %1007 = vmatprep.mubr.bf16.mxu0 0
  %1008 = vmatmul.mubr.bf16.gmra.mrb[0].mxu0 %v937
  %v1009 = vpop.f32.mrb[0].mxu0
  %v1010 = vadd.f32 0.0, %v1009
  %v1011 = vpop.f32.mrb[0].mxu0
  %v1012 = vpop.f32.mrb[0].mxu0
  %v1013 = vadd.f32 0.0, %v1012
  %v1014 = vpop.f32.mrb[0].mxu0
  %1015 = vmatprep.mubr.bf16.mxu0 0
  %1016 = vmatmul.mubr.bf16.gmra.mrb[0].mxu0 %v940
  %v1017 = vpop.f32.mrb[0].mxu0
  %v1018 = vadd.f32 0.0, %v1017
  %v1019 = vpop.f32.mrb[0].mxu0
  %v1020 = vpop.f32.mrb[0].mxu0
  %v1021 = vadd.f32 0.0, %v1020
  %v1022 = vpop.f32.mrb[0].mxu0
  %1023 = vmatprep.mubr.bf16.mxu0 0
  %1024 = vmatmul.mubr.bf16.gmra.mrb[0].mxu0 %v943
  %v1025 = vpop.f32.mrb[0].mxu0
  %v1026 = vadd.f32 0.0, %v1025
  %v1027 = vpop.f32.mrb[0].mxu0
  %v1028 = vpop.f32.mrb[0].mxu0
  %v1029 = vadd.f32 0.0, %v1028
  %v1030 = vpop.f32.mrb[0].mxu0
  %1031 = vmatprep.mubr.bf16.mxu0 0
  %1032 = vmatmul.mubr.bf16.gmra.mrb[0].mxu0 %v946
  %v1033 = vpop.f32.mrb[0].mxu0
  %v1034 = vadd.f32 0.0, %v1033
  %v1035 = vpop.f32.mrb[0].mxu0
  %v1036 = vpop.f32.mrb[0].mxu0
  %v1037 = vadd.f32 0.0, %v1036
  %v1038 = vpop.f32.mrb[0].mxu0
  %1039 = vmatprep.mubr.bf16.mxu0 0
  %1040 = vmatmul.mubr.bf16.gmra.mrb[0].mxu0 %v949
  %v1041 = vpop.f32.mrb[0].mxu0
  %v1042 = vadd.f32 0.0, %v1041
  %v1043 = vpop.f32.mrb[0].mxu0
  %v1044 = vpop.f32.mrb[0].mxu0
  %v1045 = vadd.f32 0.0, %v1044
  %v1046 = vpop.f32.mrb[0].mxu0
  %1047 = vdwg.mxu0
  %v1048 = vadd.f32 %v824, %v986
  %v1049 = vadd.f32 %v827, %v989
  %v1050 = vadd.f32 %v832, %v994
  %v1051 = vadd.f32 %v835, %v997
  %v1052 = vadd.f32 %v840, %v1002
  %v1053 = vadd.f32 %v843, %v1005
  %v1054 = vadd.f32 %v848, %v1010
  %v1055 = vadd.f32 %v851, %v1013
  %v1056 = vadd.f32 %v856, %v1018
  %v1057 = vadd.f32 %v859, %v1021
  %v1058 = vadd.f32 %v864, %v1026
  %v1059 = vadd.f32 %v867, %v1029
  %v1060 = vadd.f32 %v872, %v1034
  %v1061 = vadd.f32 %v875, %v1037
  %v1062 = vadd.f32 %v880, %v1042
  %v1063 = vadd.f32 %v883, %v1045
  %v1064 = vld [vmem:[%s4] sm:$0x1]
  %v1066 = vlaneseq
  %v1067 = vshrl.u32 %v1066, 7
  %v1068 = vsub.s32 0, %v1067
  %v1069 = vrot.slane %v1064, %v1068
  %v1071 = vadd.f32 %v1048, %v1069
  %v1072 = vadd.f32 %v1049, %v1069
  %v1073 = vadd.f32 %v1050, %v1069
  %v1074 = vadd.f32 %v1051, %v1069
  %v1075 = vadd.f32 %v1052, %v1069
  %v1076 = vadd.f32 %v1053, %v1069
  %v1077 = vadd.f32 %v1054, %v1069
  %v1078 = vadd.f32 %v1055, %v1069
  %v1079 = vadd.f32 %v1056, %v1069
  %v1080 = vadd.f32 %v1057, %v1069
  %v1081 = vadd.f32 %v1058, %v1069
  %v1082 = vadd.f32 %v1059, %v1069
  %v1083 = vadd.f32 %v1060, %v1069
  %v1084 = vadd.f32 %v1061, %v1069
  %v1085 = vadd.f32 %v1062, %v1069
  %v1086 = vadd.f32 %v1063, %v1069
  %v1087 = vmax.f32 %v1071, 0.0
  %v1088 = vmax.f32 %v1072, 0.0
  %v1089 = vmax.f32 %v1073, 0.0
  %v1090 = vmax.f32 %v1074, 0.0
  %v1091 = vmax.f32 %v1075, 0.0
  %v1092 = vmax.f32 %v1076, 0.0
  %v1093 = vmax.f32 %v1077, 0.0
  %v1094 = vmax.f32 %v1078, 0.0
  %v1095 = vmax.f32 %v1079, 0.0
  %v1096 = vmax.f32 %v1080, 0.0
  %v1097 = vmax.f32 %v1081, 0.0
  %v1098 = vmax.f32 %v1082, 0.0
  %v1099 = vmax.f32 %v1083, 0.0
  %v1100 = vmax.f32 %v1084, 0.0
  %v1101 = vmax.f32 %v1085, 0.0
  %v1102 = vmax.f32 %v1086, 0.0
  %v1103 = vld [vmem:[%s0 + $0x4] sm:$0xff]
  %v1104 = vld [vmem:[%s0 + $0xc] sm:$0xff]
  %v1105 = vld [vmem:[%s0 + $0x14] sm:$0xff]
  %v1106 = vld [vmem:[%s0 + $0x1c] sm:$0xff]
  %v1107 = vld [vmem:[%s0 + $0x24] sm:$0xff]
  %v1108 = vld [vmem:[%s0 + $0x2c] sm:$0xff]
  %v1109 = vld [vmem:[%s0 + $0x34] sm:$0xff]
  %v1110 = vld [vmem:[%s0 + $0x3c] sm:$0xff]
  %v1111 = vld [vmem:[%s0 + $0x4c] sm:$0xff]
  %v1112 = vld [vmem:[%s0 + $0x54] sm:$0xff]
  %v1113 = vld [vmem:[%s0 + $0x5c] sm:$0xff]
  %v1114 = vld [vmem:[%s0 + $0x64] sm:$0xff]
  %v1115 = vld [vmem:[%s0 + $0x6c] sm:$0xff]
  %v1116 = vld [vmem:[%s0 + $0x74] sm:$0xff]
  %v1117 = vld [vmem:[%s0 + $0x7c] sm:$0xff]
  %v1118 = vld [vmem:[%s0 + $0x84] sm:$0xff]
  %v1119 = vpack.c.bf16 %v1104, %v1103
  %v1120 = vpack.c.bf16 %v1106, %v1105
  %v1121 = vpack.c.bf16 %v1108, %v1107
  %v1122 = vpack.c.bf16 %v1110, %v1109
  %v1123 = vpack.c.bf16 %v1112, %v1111
  %v1124 = vpack.c.bf16 %v1114, %v1113
  %v1125 = vpack.c.bf16 %v1116, %v1115
  %v1126 = vpack.c.bf16 %v1118, %v1117
  %v1127 = vld [vmem:[%s5] sm:$0xf]
  %v1128 = vld [vmem:[%s5 + $0x4] sm:$0xf]
  %v1129 = vld [vmem:[%s6] sm:$0x1]
  %v1131 = vlaneseq
  %v1132 = vshrl.u32 %v1131, 7
  %v1133 = vsub.s32 0, %v1132
  %v1134 = vrot.slane %v1129, %v1133
  %v1138 = vunpack.c.l.b16 %v1127
  %v1139 = vunpack.c.l.b16 %v1128
  %v1140 = vpack.c.b16 %v1139, %v1138
  %v1143 = vsel %vm86, %v1119, 0
  %v1146 = vsel %vm86, %v1120, 0
  %v1149 = vsel %vm86, %v1121, 0
  %v1152 = vsel %vm86, %v1122, 0
  %v1155 = vsel %vm86, %v1123, 0
  %v1158 = vsel %vm86, %v1124, 0
  %v1161 = vsel %vm86, %v1125, 0
  %v1164 = vsel %vm86, %v1126, 0
  %1166 = vmatprep.subr.bf16.mxu0 0
  %1167 = vmatpush1.bf16.msra.mxu0 %v1140
  %1168 = vmatprep.subr.bf16.mxu0 0
  %1169 = vmatpush1.bf16.msra.mxu0 0
  %1170 = vmatprep.subr.bf16.mxu0 0
  %1171 = vmatpush1.bf16.msra.mxu0 0
  %1172 = vmatprep.subr.bf16.mxu0 0
  %1173 = vmatpush1.bf16.msra.mxu0 0
  %1174 = vmatprep.subr.bf16.mxu0 0
  %1175 = vmatpush1.bf16.msra.mxu0 0
  %1176 = vmatprep.subr.bf16.mxu0 0
  %1177 = vmatpush1.bf16.msra.mxu0 0
  %1178 = vmatprep.subr.bf16.mxu0 0
  %1179 = vmatpush1.bf16.msra.mxu0 0
  %1180 = vmatprep.subr.bf16.mxu0 0
  %1181 = vmatpush1.bf16.msra.mxu0 0
  %1182 = vmatprep.subr.bf16.mxu0 0
  %1183 = vmatpush1.bf16.msra.mxu0 0
  %1184 = vmatprep.subr.bf16.mxu0 0
  %1185 = vmatpush1.bf16.msra.mxu0 0
  %1186 = vmatprep.subr.bf16.mxu0 0
  %1187 = vmatpush1.bf16.msra.mxu0 0
  %1188 = vmatprep.subr.bf16.mxu0 0
  %1189 = vmatpush1.bf16.msra.mxu0 0
  %1190 = vmatprep.subr.bf16.mxu0 0
  %1191 = vmatpush1.bf16.msra.mxu0 0
  %1192 = vmatprep.subr.bf16.mxu0 0
  %1193 = vmatpush1.bf16.msra.mxu0 0
  %1194 = vmatprep.subr.bf16.mxu0 0
  %1195 = vmatpush1.bf16.msra.mxu0 0
  %1196 = vmatprep.subr.bf16.mxu0 0
  %1197 = vmatpush1.bf16.msra.mxu0 0
  %1198 = vmatprep.mubr.bf16.mxu0 0
  %1199 = vmatmul.mubr.bf16.gmra.mrb[0].mxu0 %v1143
  %v1200 = vpop.f32.mrb[0].mxu0
  %v1201 = vadd.f32 %v1134, %v1200
  %v1202 = vpop.f32.mrb[0].mxu0
  %v1203 = vpop.f32.mrb[0].mxu0
  %v1204 = vadd.f32 %v1134, %v1203
  %v1205 = vpop.f32.mrb[0].mxu0
  %1206 = vmatprep.mubr.bf16.mxu0 0
  %1207 = vmatmul.mubr.bf16.gmra.mrb[0].mxu0 %v1146
  %v1208 = vpop.f32.mrb[0].mxu0
  %v1209 = vadd.f32 %v1134, %v1208
  %v1210 = vpop.f32.mrb[0].mxu0
  %v1211 = vpop.f32.mrb[0].mxu0
  %v1212 = vadd.f32 %v1134, %v1211
  %v1213 = vpop.f32.mrb[0].mxu0
  %1214 = vmatprep.mubr.bf16.mxu0 0
  %1215 = vmatmul.mubr.bf16.gmra.mrb[0].mxu0 %v1149
  %v1216 = vpop.f32.mrb[0].mxu0
  %v1217 = vadd.f32 %v1134, %v1216
  %v1218 = vpop.f32.mrb[0].mxu0
  %v1219 = vpop.f32.mrb[0].mxu0
  %v1220 = vadd.f32 %v1134, %v1219
  %v1221 = vpop.f32.mrb[0].mxu0
  %1222 = vmatprep.mubr.bf16.mxu0 0
  %1223 = vmatmul.mubr.bf16.gmra.mrb[0].mxu0 %v1152
  %v1224 = vpop.f32.mrb[0].mxu0
  %v1225 = vadd.f32 %v1134, %v1224
  %v1226 = vpop.f32.mrb[0].mxu0
  %v1227 = vpop.f32.mrb[0].mxu0
  %v1228 = vadd.f32 %v1134, %v1227
  %v1229 = vpop.f32.mrb[0].mxu0
  %1230 = vmatprep.mubr.bf16.mxu0 0
  %1231 = vmatmul.mubr.bf16.gmra.mrb[0].mxu0 %v1155
  %v1232 = vpop.f32.mrb[0].mxu0
  %v1233 = vadd.f32 %v1134, %v1232
  %v1234 = vpop.f32.mrb[0].mxu0
  %v1235 = vpop.f32.mrb[0].mxu0
  %v1236 = vadd.f32 %v1134, %v1235
  %v1237 = vpop.f32.mrb[0].mxu0
  %1238 = vmatprep.mubr.bf16.mxu0 0
  %1239 = vmatmul.mubr.bf16.gmra.mrb[0].mxu0 %v1158
  %v1240 = vpop.f32.mrb[0].mxu0
  %v1241 = vadd.f32 %v1134, %v1240
  %v1242 = vpop.f32.mrb[0].mxu0
  %v1243 = vpop.f32.mrb[0].mxu0
  %v1244 = vadd.f32 %v1134, %v1243
  %v1245 = vpop.f32.mrb[0].mxu0
  %1246 = vmatprep.mubr.bf16.mxu0 0
  %1247 = vmatmul.mubr.bf16.gmra.mrb[0].mxu0 %v1161
  %v1248 = vpop.f32.mrb[0].mxu0
  %v1249 = vadd.f32 %v1134, %v1248
  %v1250 = vpop.f32.mrb[0].mxu0
  %v1251 = vpop.f32.mrb[0].mxu0
  %v1252 = vadd.f32 %v1134, %v1251
  %v1253 = vpop.f32.mrb[0].mxu0
  %1254 = vmatprep.mubr.bf16.mxu0 0
  %1255 = vmatmul.mubr.bf16.gmra.mrb[0].mxu0 %v1164
  %v1256 = vpop.f32.mrb[0].mxu0
  %v1257 = vadd.f32 %v1134, %v1256
  %v1258 = vpop.f32.mrb[0].mxu0
  %v1259 = vpop.f32.mrb[0].mxu0
  %v1260 = vadd.f32 %v1134, %v1259
  %v1261 = vpop.f32.mrb[0].mxu0
  %1262 = vdwg.mxu0
  %v1263 = vadd.f32 %v1087, %v1201
  %v1264 = vadd.f32 %v1088, %v1204
  %v1265 = vadd.f32 %v1089, %v1209
  %v1266 = vadd.f32 %v1090, %v1212
  %v1267 = vadd.f32 %v1091, %v1217
  %v1268 = vadd.f32 %v1092, %v1220
  %v1269 = vadd.f32 %v1093, %v1225
  %v1270 = vadd.f32 %v1094, %v1228
  %v1271 = vadd.f32 %v1095, %v1233
  %v1272 = vadd.f32 %v1096, %v1236
  %v1273 = vadd.f32 %v1097, %v1241
  %v1274 = vadd.f32 %v1098, %v1244
  %v1275 = vadd.f32 %v1099, %v1249
  %v1276 = vadd.f32 %v1100, %v1252
  %v1277 = vadd.f32 %v1101, %v1257
  %v1278 = vadd.f32 %v1102, %v1260
  %v1279 = vmax.f32 %v1263, 0.0
  %v1280 = vmax.f32 %v1264, 0.0
  %v1281 = vmax.f32 %v1265, 0.0
  %v1282 = vmax.f32 %v1266, 0.0
  %v1283 = vmax.f32 %v1267, 0.0
  %v1284 = vmax.f32 %v1268, 0.0
  %v1285 = vmax.f32 %v1269, 0.0
  %v1286 = vmax.f32 %v1270, 0.0
  %v1287 = vmax.f32 %v1271, 0.0
  %v1288 = vmax.f32 %v1272, 0.0
  %v1289 = vmax.f32 %v1273, 0.0
  %v1290 = vmax.f32 %v1274, 0.0
  %v1291 = vmax.f32 %v1275, 0.0
  %v1292 = vmax.f32 %v1276, 0.0
  %v1293 = vmax.f32 %v1277, 0.0
  %v1294 = vmax.f32 %v1278, 0.0
  %1295 = vst.msk [vmem:[%s7] sm:$0xff] %vm544, %v1279
  %1296 = vst.msk [vmem:[%s7 + $0x8] sm:$0xff] %vm544, %v1280
  %1297 = vst.msk [vmem:[%s7 + $0x10] sm:$0xff] %vm544, %v1281
  %1298 = vst.msk [vmem:[%s7 + $0x18] sm:$0xff] %vm544, %v1282
  %1299 = vst.msk [vmem:[%s7 + $0x20] sm:$0xff] %vm544, %v1283
  %1300 = vst.msk [vmem:[%s7 + $0x28] sm:$0xff] %vm544, %v1284
  %1301 = vst.msk [vmem:[%s7 + $0x30] sm:$0xff] %vm544, %v1285
  %1302 = vst.msk [vmem:[%s7 + $0x38] sm:$0xff] %vm544, %v1286
  %1303 = vst.msk [vmem:[%s7 + $0x40] sm:$0xff] %vm544, %v1287
  %1304 = vst.msk [vmem:[%s7 + $0x48] sm:$0xff] %vm544, %v1288
  %1305 = vst.msk [vmem:[%s7 + $0x50] sm:$0xff] %vm544, %v1289
  %1306 = vst.msk [vmem:[%s7 + $0x58] sm:$0xff] %vm544, %v1290
  %1307 = vst.msk [vmem:[%s7 + $0x60] sm:$0xff] %vm544, %v1291
  %1308 = vst.msk [vmem:[%s7 + $0x68] sm:$0xff] %vm544, %v1292
  %1309 = vst.msk [vmem:[%s7 + $0x70] sm:$0xff] %vm544, %v1293
  %1310 = vst.msk [vmem:[%s7 + $0x78] sm:$0xff] %vm544, %v1294
  // Predicated region
  $region30: #{tpu_custom_call.1} parent=0 // pred_check
    _
  $region31: #{tpu_custom_call.1} parent=0 // pred_check_branch
    %1312 = sbr.rel (0) target = $region33
  $region32: #{tpu_custom_call.1} parent=0 // pred_region
    _
  $region33: #{tpu_custom_call.1} parent=0 // pred_fallthru
    _
  // Predicated region
  $region34: #{tpu_custom_call.1} parent=0 // pred_check
    _
  $region35: #{tpu_custom_call.1} parent=0 // pred_check_branch
    %1314 = sbr.rel (0) target = $region37
  $region36: #{tpu_custom_call.1} parent=0 // pred_region
    _
  $region37: #{tpu_custom_call.1} parent=0 // pred_fallthru
    _

</llo_original>
